<compile_context>
chip_gen: v6e
topology: v6e:2x2x1
jax: 0.10.0
libtpu: 0.0.40
codegen_flags: <defaults>
</compile_context>

<pallas_src>
import jax
import jax.numpy as jnp
from jax import lax
from jax.experimental import pallas as pl
from jax.experimental.pallas import tpu as pltpu


# ---------------------------------------------------------------------------
# Pallas kernel 1: LSTM recurrence for one layer.
#   ix_ref : (T, B, 4H)  precomputed x_t @ W_ih.T + b_ih + b_hh (time-major)
#   h0/c0  : (B, H)      initial state
#   whh    : (H, 4H)     recurrent weight (stored transposed), VMEM-resident
# Outputs:
#   out    : (T, B, H)   hidden state sequence (time-major)
#   hN, cN : (B, H)      final state
# ---------------------------------------------------------------------------
def _lstm_recurrence_kernel(ix_ref, h0_ref, c0_ref, whh_ref,
                            out_ref, hN_ref, cN_ref):
    T = ix_ref.shape[0]
    H = whh_ref.shape[0]

    def step(t, carry):
        h, c = carry
        # single (B, H) @ (H, 4H) MXU matmul per step; everything stays in VMEM
        gates = ix_ref[t] + jnp.dot(h, whh_ref[...],
                                    preferred_element_type=jnp.float32)   # (B, 4H)
        i = jax.nn.sigmoid(gates[:, 0 * H:1 * H])       # PyTorch gate order i,f,g,o
        f = jax.nn.sigmoid(gates[:, 1 * H:2 * H])
        g = jnp.tanh(gates[:, 2 * H:3 * H])
        o = jax.nn.sigmoid(gates[:, 3 * H:4 * H])
        c = f * c + i * g
        h = o * jnp.tanh(c)
        out_ref[t] = h
        return (h, c)

    # short fixed trip count -> unroll for LLO scheduling visibility
    h, c = lax.fori_loop(0, T, step, (h0_ref[...], c0_ref[...]), unroll=True)
    hN_ref[...] = h
    cN_ref[...] = c


def lstm_layer_pallas(ix_tbg, h0, c0, whh):
    T, B, _ = ix_tbg.shape
    H = whh.shape[0]
    vmem = pl.BlockSpec(memory_space=pltpu.MemorySpace.VMEM)
    return pl.pallas_call(
        _lstm_recurrence_kernel,
        out_shape=(jax.ShapeDtypeStruct((T, B, H), jnp.float32),
                   jax.ShapeDtypeStruct((B, H), jnp.float32),
                   jax.ShapeDtypeStruct((B, H), jnp.float32)),
        in_specs=[vmem, vmem, vmem, vmem],
        out_specs=(vmem, vmem, vmem),
    )(ix_tbg, h0, c0, whh)


# ---------------------------------------------------------------------------
# Pallas kernel 2: final projection  (B*U, H) @ (H, V) + b  as one GEMM.
# ---------------------------------------------------------------------------
def _linear_kernel(x_ref, w_ref, b_ref, o_ref):
    o_ref[...] = (jnp.dot(x_ref[...], w_ref[...],
                          preferred_element_type=jnp.float32) + b_ref[...])


def linear_pallas(x2d, w, b):
    N, _ = x2d.shape
    V = w.shape[1]
    vmem = pl.BlockSpec(memory_space=pltpu.MemorySpace.VMEM)
    return pl.pallas_call(
        _linear_kernel,
        out_shape=jax.ShapeDtypeStruct((N, V), jnp.float32),
        in_specs=[vmem, vmem, vmem],
        out_specs=vmem,
    )(x2d, w, b)


# ---------------------------------------------------------------------------
# DecoderModel.forward
# ---------------------------------------------------------------------------
def decoder_forward(params, y_mat, hid=None):
    B, U = y_mat.shape
    layers = params["lstm"]
    L = len(layers)
    H = layers[0]["whh"].shape[0]

    # Embedding lookup (padding_idx row is zero, weight frozen in the reference).
    # TODO(synk): tiny gather kept in plain JAX; a Pallas DMA-gather is not
    # worthwhile at these shapes.
    emb = jnp.take(params["embed"], y_mat, axis=0)             # (B, U, E)
    x = jnp.transpose(emb, (1, 0, 2)).astype(jnp.float32)      # time-major (U, B, E)

    if hid is None:
        h_prev = jnp.zeros((L, B, H), jnp.float32)
        c_prev = jnp.zeros((L, B, H), jnp.float32)
    else:
        h_prev, c_prev = hid

    h_last, c_last = [], []
    for l, layer in enumerate(layers):
        # Batched input projection for ALL timesteps (one MXU GEMM, bias folded),
        # instead of T tiny per-step matmuls.
        ix = jnp.einsum("tbe,eg->tbg", x, layer["wih"]) + layer["b"]   # (U, B, 4H)
        x, hN, cN = lstm_layer_pallas(ix, h_prev[l], c_prev[l], layer["whh"])
        h_last.append(hN)
        c_last.append(cN)
        # TODO(synk): nn.LSTM inter-layer dropout is identity (inference semantics).

    y_out = jnp.transpose(x, (1, 0, 2))                        # (B, U, H)  == lstm output
    out = linear_pallas(y_out.reshape(B * U, H),
                        params["lin_w"], params["lin_b"])      # (B*U, V)
    h_n = jnp.stack(h_last)                                    # (L, B, H)
    c_n = jnp.stack(c_last)                                    # (L, B, H)
    return out, y_out, (h_n, c_n)


# ---------------------------------------------------------------------------
# Deterministic synthetic parameters (PyTorch-style layout, stored transposed
# so kernels consume (in, out)-shaped weights directly).
# ---------------------------------------------------------------------------
def init_params(key, vocab_size, hidden_size, num_layers, blank=0, LM=False):
    test_size = 26 if LM else vocab_size - 1
    H = hidden_size
    ks = iter(jax.random.split(key, 8 + 4 * num_layers))

    def unif(shape, bound):
        return jax.random.uniform(next(ks), shape, jnp.float32, -bound, bound)

    embed = 0.1 * jax.random.normal(next(ks), (vocab_size, test_size), jnp.float32)
    embed = embed.at[blank].set(0.0)           # padding_idx=blank

    k = H ** -0.5
    layers = []
    for l in range(num_layers):
        in_size = test_size if l == 0 else H
        layers.append(dict(
            wih=unif((in_size, 4 * H), k),                     # weight_ih_l{l}.T
            whh=unif((H, 4 * H), k),                           # weight_hh_l{l}.T
            b=unif((1, 4 * H), k) + unif((1, 4 * H), k),       # b_ih + b_hh
        ))

    lin_w = unif((H, vocab_size), k)                           # linear.weight.T
    lin_b = unif((1, vocab_size), k)
    return dict(embed=embed, lstm=layers, lin_w=lin_w, lin_b=lin_b)


if __name__ == "__main__":
    B, U = 2, 8
    vocab_size, hidden_size, embed_size = 16, 32, 16   # embed dim is vocab-1 = 15 (LM=False)
    num_layers = 2

    key = jax.random.PRNGKey(0)
    kp, ky = jax.random.split(key)
    params = init_params(kp, vocab_size, hidden_size, num_layers)

    y_ids = jax.random.randint(ky, (B, U), 0, vocab_size).astype(jnp.int32)

    fwd = jax.jit(decoder_forward)
    out, y_lstm, (h_n, c_n) = fwd(params, y_ids)
    jax.block_until_ready((out, y_lstm, h_n, c_n))

    assert out.shape == (B * U, vocab_size)
    assert y_lstm.shape == (B, U, hidden_size)
    assert h_n.shape == (num_layers, B, hidden_size)
    assert c_n.shape == (num_layers, B, hidden_size)
    print("KERNEL_OK")
</pallas_src>

<mosaic_0001>
module attributes {stable_mosaic.version = 11 : i64} {
  func.func @_linear_kernel(%arg0: memref<16x32xf32, #tpu.memory_space<vmem>>, %arg1: memref<32x16xf32, #tpu.memory_space<vmem>>, %arg2: memref<1x16xf32, #tpu.memory_space<vmem>>, %arg3: memref<16x16xf32, #tpu.memory_space<vmem>>) attributes {dimension_semantics = [], scalar_prefetch = 0 : i64, scratch_operands = 0 : i64, tpu.core_type = #tpu.core_type<tc>} {
    %c0 = arith.constant 0 : index
    %c0_0 = arith.constant 0 : index
    %0 = vector.load %arg0[%c0, %c0_0] : memref<16x32xf32, #tpu.memory_space<vmem>>, vector<16x32xf32>
    %c0_1 = arith.constant 0 : index
    %c0_2 = arith.constant 0 : index
    %1 = vector.load %arg1[%c0_1, %c0_2] : memref<32x16xf32, #tpu.memory_space<vmem>>, vector<32x16xf32>
    %cst = arith.constant dense<0.000000e+00> : vector<16x16xf32>
    %2 = tpu.matmul %0, %1, %cst {dimension_numbers = #tpu.dot_dimension_numbers<[1], [0], [0], [1], [0, 0, 1, 1], [], []>} : vector<16x32xf32>, vector<32x16xf32>, vector<16x16xf32> -> vector<16x16xf32>
    %c0_3 = arith.constant 0 : index
    %c0_4 = arith.constant 0 : index
    %3 = vector.load %arg2[%c0_3, %c0_4] : memref<1x16xf32, #tpu.memory_space<vmem>>, vector<1x16xf32>
    %4 = vector.broadcast %3 : vector<1x16xf32> to vector<16x16xf32>
    %5 = arith.addf %2, %4 : vector<16x16xf32>
    %c0_5 = arith.constant 0 : index
    %c0_6 = arith.constant 0 : index
    %6 = vector.load %arg3[%c0_5, %c0_6] : memref<16x16xf32, #tpu.memory_space<vmem>>, vector<16x16xf32>
    tpu.vector_store %arg3[%c0_5, %c0_6], %5 {strides = array<i32>} : memref<16x16xf32, #tpu.memory_space<vmem>>, vector<16x16xf32>,
    return
  }
}

module attributes {stable_mosaic.version = 11 : i64} {
  func.func @_lstm_recurrence_kernel(%arg0: memref<8x2x128xf32, #tpu.memory_space<vmem>>, %arg1: memref<2x32xf32, #tpu.memory_space<vmem>>, %arg2: memref<2x32xf32, #tpu.memory_space<vmem>>, %arg3: memref<32x128xf32, #tpu.memory_space<vmem>>, %arg4: memref<8x2x32xf32, #tpu.memory_space<vmem>>, %arg5: memref<2x32xf32, #tpu.memory_space<vmem>>, %arg6: memref<2x32xf32, #tpu.memory_space<vmem>>) attributes {dimension_semantics = [], scalar_prefetch = 0 : i64, scratch_operands = 0 : i64, tpu.core_type = #tpu.core_type<tc>} {
    %c0 = arith.constant 0 : index
    %c0_0 = arith.constant 0 : index
    %0 = vector.load %arg1[%c0, %c0_0] : memref<2x32xf32, #tpu.memory_space<vmem>>, vector<2x32xf32>
    %c0_1 = arith.constant 0 : index
    %c0_2 = arith.constant 0 : index
    %1 = vector.load %arg2[%c0_1, %c0_2] : memref<2x32xf32, #tpu.memory_space<vmem>>, vector<2x32xf32>
    %c0_i32 = arith.constant 0 : i32
    %2 = arith.index_cast %c0_i32 : i32 to index
    %c0_3 = arith.constant 0 : index
    %c0_4 = arith.constant 0 : index
    %3 = vector.load %arg0[%2, %c0_3, %c0_4] : memref<8x2x128xf32, #tpu.memory_space<vmem>>, vector<1x2x128xf32>
    %4 = vector.shape_cast %3 : vector<1x2x128xf32> to vector<2x128xf32>
    %c0_5 = arith.constant 0 : index
    %c0_6 = arith.constant 0 : index
    %5 = vector.load %arg3[%c0_5, %c0_6] : memref<32x128xf32, #tpu.memory_space<vmem>>, vector<32x128xf32>
    %cst = arith.constant dense<0.000000e+00> : vector<2x128xf32>
    %6 = tpu.matmul %0, %5, %cst {dimension_numbers = #tpu.dot_dimension_numbers<[1], [0], [0], [1], [0, 0, 1, 1], [], []>} : vector<2x32xf32>, vector<32x128xf32>, vector<2x128xf32> -> vector<2x128xf32>
    %7 = arith.addf %4, %6 : vector<2x128xf32>
    %8 = vector.extract_strided_slice %7 {offsets = [0, 0], sizes = [2, 32], strides = [1, 1]} : vector<2x128xf32> to vector<2x32xf32>
    %9 = arith.negf %8 : vector<2x32xf32>
    %10 = math.exp %9 : vector<2x32xf32>
    %cst_7 = arith.constant 1.000000e+00 : f32
    %11 = vector.broadcast %cst_7 : f32 to vector<2x32xf32>
    %12 = arith.addf %11, %10 : vector<2x32xf32>
    %13 = arith.divf %11, %12 : vector<2x32xf32>
    %14 = vector.extract_strided_slice %7 {offsets = [0, 32], sizes = [2, 32], strides = [1, 1]} : vector<2x128xf32> to vector<2x32xf32>
    %15 = arith.negf %14 : vector<2x32xf32>
    %16 = math.exp %15 : vector<2x32xf32>
    %cst_8 = arith.constant 1.000000e+00 : f32
    %17 = vector.broadcast %cst_8 : f32 to vector<2x32xf32>
    %18 = arith.addf %17, %16 : vector<2x32xf32>
    %19 = arith.divf %17, %18 : vector<2x32xf32>
    %20 = vector.extract_strided_slice %7 {offsets = [0, 64], sizes = [2, 32], strides = [1, 1]} : vector<2x128xf32> to vector<2x32xf32>
    %21 = math.tanh %20 : vector<2x32xf32>
    %22 = vector.extract_strided_slice %7 {offsets = [0, 96], sizes = [2, 32], strides = [1, 1]} : vector<2x128xf32> to vector<2x32xf32>
    %23 = arith.negf %22 : vector<2x32xf32>
    %24 = math.exp %23 : vector<2x32xf32>
    %cst_9 = arith.constant 1.000000e+00 : f32
    %25 = vector.broadcast %cst_9 : f32 to vector<2x32xf32>
    %26 = arith.addf %25, %24 : vector<2x32xf32>
    %27 = arith.divf %25, %26 : vector<2x32xf32>
    %28 = arith.mulf %19, %1 : vector<2x32xf32>
    %29 = arith.mulf %13, %21 : vector<2x32xf32>
    %30 = arith.addf %28, %29 : vector<2x32xf32>
    %31 = math.tanh %30 : vector<2x32xf32>
    %32 = arith.mulf %27, %31 : vector<2x32xf32>
    %33 = arith.index_cast %c0_i32 : i32 to index
    %c0_10 = arith.constant 0 : index
    %c0_11 = arith.constant 0 : index
    %34 = vector.load %arg4[%33, %c0_10, %c0_11] : memref<8x2x32xf32, #tpu.memory_space<vmem>>, vector<1x2x32xf32>
    %35 = vector.shape_cast %34 : vector<1x2x32xf32> to vector<2x32xf32>
    %36 = vector.shape_cast %32 : vector<2x32xf32> to vector<1x2x32xf32>
    tpu.vector_store %arg4[%33, %c0_10, %c0_11], %36 {strides = array<i32>} : memref<8x2x32xf32, #tpu.memory_space<vmem>>, vector<1x2x32xf32>,
    %c1_i32 = arith.constant 1 : i32
    %37 = arith.index_cast %c1_i32 : i32 to index
    %c0_12 = arith.constant 0 : index
    %c0_13 = arith.constant 0 : index
    %38 = vector.load %arg0[%37, %c0_12, %c0_13] : memref<8x2x128xf32, #tpu.memory_space<vmem>>, vector<1x2x128xf32>
    %39 = vector.shape_cast %38 : vector<1x2x128xf32> to vector<2x128xf32>
    %c0_14 = arith.constant 0 : index
    %c0_15 = arith.constant 0 : index
    %40 = vector.load %arg3[%c0_14, %c0_15] : memref<32x128xf32, #tpu.memory_space<vmem>>, vector<32x128xf32>
    %cst_16 = arith.constant dense<0.000000e+00> : vector<2x128xf32>
    %41 = tpu.matmul %32, %40, %cst_16 {dimension_numbers = #tpu.dot_dimension_numbers<[1], [0], [0], [1], [0, 0, 1, 1], [], []>} : vector<2x32xf32>, vector<32x128xf32>, vector<2x128xf32> -> vector<2x128xf32>
    %42 = arith.addf %39, %41 : vector<2x128xf32>
    %43 = vector.extract_strided_slice %42 {offsets = [0, 0], sizes = [2, 32], strides = [1, 1]} : vector<2x128xf32> to vector<2x32xf32>
    %44 = arith.negf %43 : vector<2x32xf32>
    %45 = math.exp %44 : vector<2x32xf32>
    %cst_17 = arith.constant 1.000000e+00 : f32
    %46 = vector.broadcast %cst_17 : f32 to vector<2x32xf32>
    %47 = arith.addf %46, %45 : vector<2x32xf32>
    %48 = arith.divf %46, %47 : vector<2x32xf32>
    %49 = vector.extract_strided_slice %42 {offsets = [0, 32], sizes = [2, 32], strides = [1, 1]} : vector<2x128xf32> to vector<2x32xf32>
    %50 = arith.negf %49 : vector<2x32xf32>
    %51 = math.exp %50 : vector<2x32xf32>
    %cst_18 = arith.constant 1.000000e+00 : f32
    %52 = vector.broadcast %cst_18 : f32 to vector<2x32xf32>
    %53 = arith.addf %52, %51 : vector<2x32xf32>
    %54 = arith.divf %52, %53 : vector<2x32xf32>
    %55 = vector.extract_strided_slice %42 {offsets = [0, 64], sizes = [2, 32], strides = [1, 1]} : vector<2x128xf32> to vector<2x32xf32>
    %56 = math.tanh %55 : vector<2x32xf32>
    %57 = vector.extract_strided_slice %42 {offsets = [0, 96], sizes = [2, 32], strides = [1, 1]} : vector<2x128xf32> to vector<2x32xf32>
    %58 = arith.negf %57 : vector<2x32xf32>
    %59 = math.exp %58 : vector<2x32xf32>
    %cst_19 = arith.constant 1.000000e+00 : f32
    %60 = vector.broadcast %cst_19 : f32 to vector<2x32xf32>
    %61 = arith.addf %60, %59 : vector<2x32xf32>
    %62 = arith.divf %60, %61 : vector<2x32xf32>
    %63 = arith.mulf %54, %30 : vector<2x32xf32>
    %64 = arith.mulf %48, %56 : vector<2x32xf32>
    %65 = arith.addf %63, %64 : vector<2x32xf32>
    %66 = math.tanh %65 : vector<2x32xf32>
    %67 = arith.mulf %62, %66 : vector<2x32xf32>
    %68 = arith.index_cast %c1_i32 : i32 to index
    %c0_20 = arith.constant 0 : index
    %c0_21 = arith.constant 0 : index
    %69 = vector.load %arg4[%68, %c0_20, %c0_21] : memref<8x2x32xf32, #tpu.memory_space<vmem>>, vector<1x2x32xf32>
    %70 = vector.shape_cast %69 : vector<1x2x32xf32> to vector<2x32xf32>
    %71 = vector.shape_cast %67 : vector<2x32xf32> to vector<1x2x32xf32>
    tpu.vector_store %arg4[%68, %c0_20, %c0_21], %71 {strides = array<i32>} : memref<8x2x32xf32, #tpu.memory_space<vmem>>, vector<1x2x32xf32>,
    %c2_i32 = arith.constant 2 : i32
    %72 = arith.index_cast %c2_i32 : i32 to index
    %c0_22 = arith.constant 0 : index
    %c0_23 = arith.constant 0 : index
    %73 = vector.load %arg0[%72, %c0_22, %c0_23] : memref<8x2x128xf32, #tpu.memory_space<vmem>>, vector<1x2x128xf32>
    %74 = vector.shape_cast %73 : vector<1x2x128xf32> to vector<2x128xf32>
    %c0_24 = arith.constant 0 : index
    %c0_25 = arith.constant 0 : index
    %75 = vector.load %arg3[%c0_24, %c0_25] : memref<32x128xf32, #tpu.memory_space<vmem>>, vector<32x128xf32>
    %cst_26 = arith.constant dense<0.000000e+00> : vector<2x128xf32>
    %76 = tpu.matmul %67, %75, %cst_26 {dimension_numbers = #tpu.dot_dimension_numbers<[1], [0], [0], [1], [0, 0, 1, 1], [], []>} : vector<2x32xf32>, vector<32x128xf32>, vector<2x128xf32> -> vector<2x128xf32>
    %77 = arith.addf %74, %76 : vector<2x128xf32>
    %78 = vector.extract_strided_slice %77 {offsets = [0, 0], sizes = [2, 32], strides = [1, 1]} : vector<2x128xf32> to vector<2x32xf32>
    %79 = arith.negf %78 : vector<2x32xf32>
    %80 = math.exp %79 : vector<2x32xf32>
    %cst_27 = arith.constant 1.000000e+00 : f32
    %81 = vector.broadcast %cst_27 : f32 to vector<2x32xf32>
    %82 = arith.addf %81, %80 : vector<2x32xf32>
    %83 = arith.divf %81, %82 : vector<2x32xf32>
    %84 = vector.extract_strided_slice %77 {offsets = [0, 32], sizes = [2, 32], strides = [1, 1]} : vector<2x128xf32> to vector<2x32xf32>
    %85 = arith.negf %84 : vector<2x32xf32>
    %86 = math.exp %85 : vector<2x32xf32>
    %cst_28 = arith.constant 1.000000e+00 : f32
    %87 = vector.broadcast %cst_28 : f32 to vector<2x32xf32>
    %88 = arith.addf %87, %86 : vector<2x32xf32>
    %89 = arith.divf %87, %88 : vector<2x32xf32>
    %90 = vector.extract_strided_slice %77 {offsets = [0, 64], sizes = [2, 32], strides = [1, 1]} : vector<2x128xf32> to vector<2x32xf32>
    %91 = math.tanh %90 : vector<2x32xf32>
    %92 = vector.extract_strided_slice %77 {offsets = [0, 96], sizes = [2, 32], strides = [1, 1]} : vector<2x128xf32> to vector<2x32xf32>
    %93 = arith.negf %92 : vector<2x32xf32>
    %94 = math.exp %93 : vector<2x32xf32>
    %cst_29 = arith.constant 1.000000e+00 : f32
    %95 = vector.broadcast %cst_29 : f32 to vector<2x32xf32>
    %96 = arith.addf %95, %94 : vector<2x32xf32>
    %97 = arith.divf %95, %96 : vector<2x32xf32>
    %98 = arith.mulf %89, %65 : vector<2x32xf32>
    %99 = arith.mulf %83, %91 : vector<2x32xf32>
    %100 = arith.addf %98, %99 : vector<2x32xf32>
    %101 = math.tanh %100 : vector<2x32xf32>
    %102 = arith.mulf %97, %101 : vector<2x32xf32>
    %103 = arith.index_cast %c2_i32 : i32 to index
    %c0_30 = arith.constant 0 : index
    %c0_31 = arith.constant 0 : index
    %104 = vector.load %arg4[%103, %c0_30, %c0_31] : memref<8x2x32xf32, #tpu.memory_space<vmem>>, vector<1x2x32xf32>
    %105 = vector.shape_cast %104 : vector<1x2x32xf32> to vector<2x32xf32>
    %106 = vector.shape_cast %102 : vector<2x32xf32> to vector<1x2x32xf32>
    tpu.vector_store %arg4[%103, %c0_30, %c0_31], %106 {strides = array<i32>} : memref<8x2x32xf32, #tpu.memory_space<vmem>>, vector<1x2x32xf32>,
    %c3_i32 = arith.constant 3 : i32
    %107 = arith.index_cast %c3_i32 : i32 to index
    %c0_32 = arith.constant 0 : index
    %c0_33 = arith.constant 0 : index
    %108 = vector.load %arg0[%107, %c0_32, %c0_33] : memref<8x2x128xf32, #tpu.memory_space<vmem>>, vector<1x2x128xf32>
    %109 = vector.shape_cast %108 : vector<1x2x128xf32> to vector<2x128xf32>
    %c0_34 = arith.constant 0 : index
    %c0_35 = arith.constant 0 : index
    %110 = vector.load %arg3[%c0_34, %c0_35] : memref<32x128xf32, #tpu.memory_space<vmem>>, vector<32x128xf32>
    %cst_36 = arith.constant dense<0.000000e+00> : vector<2x128xf32>
    %111 = tpu.matmul %102, %110, %cst_36 {dimension_numbers = #tpu.dot_dimension_numbers<[1], [0], [0], [1], [0, 0, 1, 1], [], []>} : vector<2x32xf32>, vector<32x128xf32>, vector<2x128xf32> -> vector<2x128xf32>
    %112 = arith.addf %109, %111 : vector<2x128xf32>
    %113 = vector.extract_strided_slice %112 {offsets = [0, 0], sizes = [2, 32], strides = [1, 1]} : vector<2x128xf32> to vector<2x32xf32>
    %114 = arith.negf %113 : vector<2x32xf32>
    %115 = math.exp %114 : vector<2x32xf32>
    %cst_37 = arith.constant 1.000000e+00 : f32
    %116 = vector.broadcast %cst_37 : f32 to vector<2x32xf32>
    %117 = arith.addf %116, %115 : vector<2x32xf32>
    %118 = arith.divf %116, %117 : vector<2x32xf32>
    %119 = vector.extract_strided_slice %112 {offsets = [0, 32], sizes = [2, 32], strides = [1, 1]} : vector<2x128xf32> to vector<2x32xf32>
    %120 = arith.negf %119 : vector<2x32xf32>
    %121 = math.exp %120 : vector<2x32xf32>
    %cst_38 = arith.constant 1.000000e+00 : f32
    %122 = vector.broadcast %cst_38 : f32 to vector<2x32xf32>
    %123 = arith.addf %122, %121 : vector<2x32xf32>
    %124 = arith.divf %122, %123 : vector<2x32xf32>
    %125 = vector.extract_strided_slice %112 {offsets = [0, 64], sizes = [2, 32], strides = [1, 1]} : vector<2x128xf32> to vector<2x32xf32>
    %126 = math.tanh %125 : vector<2x32xf32>
    %127 = vector.extract_strided_slice %112 {offsets = [0, 96], sizes = [2, 32], strides = [1, 1]} : vector<2x128xf32> to vector<2x32xf32>
    %128 = arith.negf %127 : vector<2x32xf32>
    %129 = math.exp %128 : vector<2x32xf32>
    %cst_39 = arith.constant 1.000000e+00 : f32
    %130 = vector.broadcast %cst_39 : f32 to vector<2x32xf32>
    %131 = arith.addf %130, %129 : vector<2x32xf32>
    %132 = arith.divf %130, %131 : vector<2x32xf32>
    %133 = arith.mulf %124, %100 : vector<2x32xf32>
    %134 = arith.mulf %118, %126 : vector<2x32xf32>
    %135 = arith.addf %133, %134 : vector<2x32xf32>
    %136 = math.tanh %135 : vector<2x32xf32>
    %137 = arith.mulf %132, %136 : vector<2x32xf32>
    %138 = arith.index_cast %c3_i32 : i32 to index
    %c0_40 = arith.constant 0 : index
    %c0_41 = arith.constant 0 : index
    %139 = vector.load %arg4[%138, %c0_40, %c0_41] : memref<8x2x32xf32, #tpu.memory_space<vmem>>, vector<1x2x32xf32>
    %140 = vector.shape_cast %139 : vector<1x2x32xf32> to vector<2x32xf32>
    %141 = vector.shape_cast %137 : vector<2x32xf32> to vector<1x2x32xf32>
    tpu.vector_store %arg4[%138, %c0_40, %c0_41], %141 {strides = array<i32>} : memref<8x2x32xf32, #tpu.memory_space<vmem>>, vector<1x2x32xf32>,
    %c4_i32 = arith.constant 4 : i32
    %142 = arith.index_cast %c4_i32 : i32 to index
    %c0_42 = arith.constant 0 : index
    %c0_43 = arith.constant 0 : index
    %143 = vector.load %arg0[%142, %c0_42, %c0_43] : memref<8x2x128xf32, #tpu.memory_space<vmem>>, vector<1x2x128xf32>
    %144 = vector.shape_cast %143 : vector<1x2x128xf32> to vector<2x128xf32>
    %c0_44 = arith.constant 0 : index
    %c0_45 = arith.constant 0 : index
    %145 = vector.load %arg3[%c0_44, %c0_45] : memref<32x128xf32, #tpu.memory_space<vmem>>, vector<32x128xf32>
    %cst_46 = arith.constant dense<0.000000e+00> : vector<2x128xf32>
    %146 = tpu.matmul %137, %145, %cst_46 {dimension_numbers = #tpu.dot_dimension_numbers<[1], [0], [0], [1], [0, 0, 1, 1], [], []>} : vector<2x32xf32>, vector<32x128xf32>, vector<2x128xf32> -> vector<2x128xf32>
    %147 = arith.addf %144, %146 : vector<2x128xf32>
    %148 = vector.extract_strided_slice %147 {offsets = [0, 0], sizes = [2, 32], strides = [1, 1]} : vector<2x128xf32> to vector<2x32xf32>
    %149 = arith.negf %148 : vector<2x32xf32>
    %150 = math.exp %149 : vector<2x32xf32>
    %cst_47 = arith.constant 1.000000e+00 : f32
    %151 = vector.broadcast %cst_47 : f32 to vector<2x32xf32>
    %152 = arith.addf %151, %150 : vector<2x32xf32>
    %153 = arith.divf %151, %152 : vector<2x32xf32>
    %154 = vector.extract_strided_slice %147 {offsets = [0, 32], sizes = [2, 32], strides = [1, 1]} : vector<2x128xf32> to vector<2x32xf32>
    %155 = arith.negf %154 : vector<2x32xf32>
    %156 = math.exp %155 : vector<2x32xf32>
    %cst_48 = arith.constant 1.000000e+00 : f32
    %157 = vector.broadcast %cst_48 : f32 to vector<2x32xf32>
    %158 = arith.addf %157, %156 : vector<2x32xf32>
    %159 = arith.divf %157, %158 : vector<2x32xf32>
    %160 = vector.extract_strided_slice %147 {offsets = [0, 64], sizes = [2, 32], strides = [1, 1]} : vector<2x128xf32> to vector<2x32xf32>
    %161 = math.tanh %160 : vector<2x32xf32>
    %162 = vector.extract_strided_slice %147 {offsets = [0, 96], sizes = [2, 32], strides = [1, 1]} : vector<2x128xf32> to vector<2x32xf32>
    %163 = arith.negf %162 : vector<2x32xf32>
    %164 = math.exp %163 : vector<2x32xf32>
    %cst_49 = arith.constant 1.000000e+00 : f32
    %165 = vector.broadcast %cst_49 : f32 to vector<2x32xf32>
    %166 = arith.addf %165, %164 : vector<2x32xf32>
    %167 = arith.divf %165, %166 : vector<2x32xf32>
    %168 = arith.mulf %159, %135 : vector<2x32xf32>
    %169 = arith.mulf %153, %161 : vector<2x32xf32>
    %170 = arith.addf %168, %169 : vector<2x32xf32>
    %171 = math.tanh %170 : vector<2x32xf32>
    %172 = arith.mulf %167, %171 : vector<2x32xf32>
    %173 = arith.index_cast %c4_i32 : i32 to index
    %c0_50 = arith.constant 0 : index
    %c0_51 = arith.constant 0 : index
    %174 = vector.load %arg4[%173, %c0_50, %c0_51] : memref<8x2x32xf32, #tpu.memory_space<vmem>>, vector<1x2x32xf32>
    %175 = vector.shape_cast %174 : vector<1x2x32xf32> to vector<2x32xf32>
    %176 = vector.shape_cast %172 : vector<2x32xf32> to vector<1x2x32xf32>
    tpu.vector_store %arg4[%173, %c0_50, %c0_51], %176 {strides = array<i32>} : memref<8x2x32xf32, #tpu.memory_space<vmem>>, vector<1x2x32xf32>,
    %c5_i32 = arith.constant 5 : i32
    %177 = arith.index_cast %c5_i32 : i32 to index
    %c0_52 = arith.constant 0 : index
    %c0_53 = arith.constant 0 : index
    %178 = vector.load %arg0[%177, %c0_52, %c0_53] : memref<8x2x128xf32, #tpu.memory_space<vmem>>, vector<1x2x128xf32>
    %179 = vector.shape_cast %178 : vector<1x2x128xf32> to vector<2x128xf32>
    %c0_54 = arith.constant 0 : index
    %c0_55 = arith.constant 0 : index
    %180 = vector.load %arg3[%c0_54, %c0_55] : memref<32x128xf32, #tpu.memory_space<vmem>>, vector<32x128xf32>
    %cst_56 = arith.constant dense<0.000000e+00> : vector<2x128xf32>
    %181 = tpu.matmul %172, %180, %cst_56 {dimension_numbers = #tpu.dot_dimension_numbers<[1], [0], [0], [1], [0, 0, 1, 1], [], []>} : vector<2x32xf32>, vector<32x128xf32>, vector<2x128xf32> -> vector<2x128xf32>
    %182 = arith.addf %179, %181 : vector<2x128xf32>
    %183 = vector.extract_strided_slice %182 {offsets = [0, 0], sizes = [2, 32], strides = [1, 1]} : vector<2x128xf32> to vector<2x32xf32>
    %184 = arith.negf %183 : vector<2x32xf32>
    %185 = math.exp %184 : vector<2x32xf32>
    %cst_57 = arith.constant 1.000000e+00 : f32
    %186 = vector.broadcast %cst_57 : f32 to vector<2x32xf32>
    %187 = arith.addf %186, %185 : vector<2x32xf32>
    %188 = arith.divf %186, %187 : vector<2x32xf32>
    %189 = vector.extract_strided_slice %182 {offsets = [0, 32], sizes = [2, 32], strides = [1, 1]} : vector<2x128xf32> to vector<2x32xf32>
    %190 = arith.negf %189 : vector<2x32xf32>
    %191 = math.exp %190 : vector<2x32xf32>
    %cst_58 = arith.constant 1.000000e+00 : f32
    %192 = vector.broadcast %cst_58 : f32 to vector<2x32xf32>
    %193 = arith.addf %192, %191 : vector<2x32xf32>
    %194 = arith.divf %192, %193 : vector<2x32xf32>
    %195 = vector.extract_strided_slice %182 {offsets = [0, 64], sizes = [2, 32], strides = [1, 1]} : vector<2x128xf32> to vector<2x32xf32>
    %196 = math.tanh %195 : vector<2x32xf32>
    %197 = vector.extract_strided_slice %182 {offsets = [0, 96], sizes = [2, 32], strides = [1, 1]} : vector<2x128xf32> to vector<2x32xf32>
    %198 = arith.negf %197 : vector<2x32xf32>
    %199 = math.exp %198 : vector<2x32xf32>
    %cst_59 = arith.constant 1.000000e+00 : f32
    %200 = vector.broadcast %cst_59 : f32 to vector<2x32xf32>
    %201 = arith.addf %200, %199 : vector<2x32xf32>
    %202 = arith.divf %200, %201 : vector<2x32xf32>
    %203 = arith.mulf %194, %170 : vector<2x32xf32>
    %204 = arith.mulf %188, %196 : vector<2x32xf32>
    %205 = arith.addf %203, %204 : vector<2x32xf32>
    %206 = math.tanh %205 : vector<2x32xf32>
    %207 = arith.mulf %202, %206 : vector<2x32xf32>
    %208 = arith.index_cast %c5_i32 : i32 to index
    %c0_60 = arith.constant 0 : index
    %c0_61 = arith.constant 0 : index
    %209 = vector.load %arg4[%208, %c0_60, %c0_61] : memref<8x2x32xf32, #tpu.memory_space<vmem>>, vector<1x2x32xf32>
    %210 = vector.shape_cast %209 : vector<1x2x32xf32> to vector<2x32xf32>
    %211 = vector.shape_cast %207 : vector<2x32xf32> to vector<1x2x32xf32>
    tpu.vector_store %arg4[%208, %c0_60, %c0_61], %211 {strides = array<i32>} : memref<8x2x32xf32, #tpu.memory_space<vmem>>, vector<1x2x32xf32>,
    %c6_i32 = arith.constant 6 : i32
    %212 = arith.index_cast %c6_i32 : i32 to index
    %c0_62 = arith.constant 0 : index
    %c0_63 = arith.constant 0 : index
    %213 = vector.load %arg0[%212, %c0_62, %c0_63] : memref<8x2x128xf32, #tpu.memory_space<vmem>>, vector<1x2x128xf32>
    %214 = vector.shape_cast %213 : vector<1x2x128xf32> to vector<2x128xf32>
    %c0_64 = arith.constant 0 : index
    %c0_65 = arith.constant 0 : index
    %215 = vector.load %arg3[%c0_64, %c0_65] : memref<32x128xf32, #tpu.memory_space<vmem>>, vector<32x128xf32>
    %cst_66 = arith.constant dense<0.000000e+00> : vector<2x128xf32>
    %216 = tpu.matmul %207, %215, %cst_66 {dimension_numbers = #tpu.dot_dimension_numbers<[1], [0], [0], [1], [0, 0, 1, 1], [], []>} : vector<2x32xf32>, vector<32x128xf32>, vector<2x128xf32> -> vector<2x128xf32>
    %217 = arith.addf %214, %216 : vector<2x128xf32>
    %218 = vector.extract_strided_slice %217 {offsets = [0, 0], sizes = [2, 32], strides = [1, 1]} : vector<2x128xf32> to vector<2x32xf32>
    %219 = arith.negf %218 : vector<2x32xf32>
    %220 = math.exp %219 : vector<2x32xf32>
    %cst_67 = arith.constant 1.000000e+00 : f32
    %221 = vector.broadcast %cst_67 : f32 to vector<2x32xf32>
    %222 = arith.addf %221, %220 : vector<2x32xf32>
    %223 = arith.divf %221, %222 : vector<2x32xf32>
    %224 = vector.extract_strided_slice %217 {offsets = [0, 32], sizes = [2, 32], strides = [1, 1]} : vector<2x128xf32> to vector<2x32xf32>
    %225 = arith.negf %224 : vector<2x32xf32>
    %226 = math.exp %225 : vector<2x32xf32>
    %cst_68 = arith.constant 1.000000e+00 : f32
    %227 = vector.broadcast %cst_68 : f32 to vector<2x32xf32>
    %228 = arith.addf %227, %226 : vector<2x32xf32>
    %229 = arith.divf %227, %228 : vector<2x32xf32>
    %230 = vector.extract_strided_slice %217 {offsets = [0, 64], sizes = [2, 32], strides = [1, 1]} : vector<2x128xf32> to vector<2x32xf32>
    %231 = math.tanh %230 : vector<2x32xf32>
    %232 = vector.extract_strided_slice %217 {offsets = [0, 96], sizes = [2, 32], strides = [1, 1]} : vector<2x128xf32> to vector<2x32xf32>
    %233 = arith.negf %232 : vector<2x32xf32>
    %234 = math.exp %233 : vector<2x32xf32>
    %cst_69 = arith.constant 1.000000e+00 : f32
    %235 = vector.broadcast %cst_69 : f32 to vector<2x32xf32>
    %236 = arith.addf %235, %234 : vector<2x32xf32>
    %237 = arith.divf %235, %236 : vector<2x32xf32>
    %238 = arith.mulf %229, %205 : vector<2x32xf32>
    %239 = arith.mulf %223, %231 : vector<2x32xf32>
    %240 = arith.addf %238, %239 : vector<2x32xf32>
    %241 = math.tanh %240 : vector<2x32xf32>
    %242 = arith.mulf %237, %241 : vector<2x32xf32>
    %243 = arith.index_cast %c6_i32 : i32 to index
    %c0_70 = arith.constant 0 : index
    %c0_71 = arith.constant 0 : index
    %244 = vector.load %arg4[%243, %c0_70, %c0_71] : memref<8x2x32xf32, #tpu.memory_space<vmem>>, vector<1x2x32xf32>
    %245 = vector.shape_cast %244 : vector<1x2x32xf32> to vector<2x32xf32>
    %246 = vector.shape_cast %242 : vector<2x32xf32> to vector<1x2x32xf32>
    tpu.vector_store %arg4[%243, %c0_70, %c0_71], %246 {strides = array<i32>} : memref<8x2x32xf32, #tpu.memory_space<vmem>>, vector<1x2x32xf32>,
    %c7_i32 = arith.constant 7 : i32
    %247 = arith.index_cast %c7_i32 : i32 to index
    %c0_72 = arith.constant 0 : index
    %c0_73 = arith.constant 0 : index
    %248 = vector.load %arg0[%247, %c0_72, %c0_73] : memref<8x2x128xf32, #tpu.memory_space<vmem>>, vector<1x2x128xf32>
    %249 = vector.shape_cast %248 : vector<1x2x128xf32> to vector<2x128xf32>
    %c0_74 = arith.constant 0 : index
    %c0_75 = arith.constant 0 : index
    %250 = vector.load %arg3[%c0_74, %c0_75] : memref<32x128xf32, #tpu.memory_space<vmem>>, vector<32x128xf32>
    %cst_76 = arith.constant dense<0.000000e+00> : vector<2x128xf32>
    %251 = tpu.matmul %242, %250, %cst_76 {dimension_numbers = #tpu.dot_dimension_numbers<[1], [0], [0], [1], [0, 0, 1, 1], [], []>} : vector<2x32xf32>, vector<32x128xf32>, vector<2x128xf32> -> vector<2x128xf32>
    %252 = arith.addf %249, %251 : vector<2x128xf32>
    %253 = vector.extract_strided_slice %252 {offsets = [0, 0], sizes = [2, 32], strides = [1, 1]} : vector<2x128xf32> to vector<2x32xf32>
    %254 = arith.negf %253 : vector<2x32xf32>
    %255 = math.exp %254 : vector<2x32xf32>
    %cst_77 = arith.constant 1.000000e+00 : f32
    %256 = vector.broadcast %cst_77 : f32 to vector<2x32xf32>
    %257 = arith.addf %256, %255 : vector<2x32xf32>
    %258 = arith.divf %256, %257 : vector<2x32xf32>
    %259 = vector.extract_strided_slice %252 {offsets = [0, 32], sizes = [2, 32], strides = [1, 1]} : vector<2x128xf32> to vector<2x32xf32>
    %260 = arith.negf %259 : vector<2x32xf32>
    %261 = math.exp %260 : vector<2x32xf32>
    %cst_78 = arith.constant 1.000000e+00 : f32
    %262 = vector.broadcast %cst_78 : f32 to vector<2x32xf32>
    %263 = arith.addf %262, %261 : vector<2x32xf32>
    %264 = arith.divf %262, %263 : vector<2x32xf32>
    %265 = vector.extract_strided_slice %252 {offsets = [0, 64], sizes = [2, 32], strides = [1, 1]} : vector<2x128xf32> to vector<2x32xf32>
    %266 = math.tanh %265 : vector<2x32xf32>
    %267 = vector.extract_strided_slice %252 {offsets = [0, 96], sizes = [2, 32], strides = [1, 1]} : vector<2x128xf32> to vector<2x32xf32>
    %268 = arith.negf %267 : vector<2x32xf32>
    %269 = math.exp %268 : vector<2x32xf32>
    %cst_79 = arith.constant 1.000000e+00 : f32
    %270 = vector.broadcast %cst_79 : f32 to vector<2x32xf32>
    %271 = arith.addf %270, %269 : vector<2x32xf32>
    %272 = arith.divf %270, %271 : vector<2x32xf32>
    %273 = arith.mulf %264, %240 : vector<2x32xf32>
    %274 = arith.mulf %258, %266 : vector<2x32xf32>
    %275 = arith.addf %273, %274 : vector<2x32xf32>
    %276 = math.tanh %275 : vector<2x32xf32>
    %277 = arith.mulf %272, %276 : vector<2x32xf32>
    %278 = arith.index_cast %c7_i32 : i32 to index
    %c0_80 = arith.constant 0 : index
    %c0_81 = arith.constant 0 : index
    %279 = vector.load %arg4[%278, %c0_80, %c0_81] : memref<8x2x32xf32, #tpu.memory_space<vmem>>, vector<1x2x32xf32>
    %280 = vector.shape_cast %279 : vector<1x2x32xf32> to vector<2x32xf32>
    %281 = vector.shape_cast %277 : vector<2x32xf32> to vector<1x2x32xf32>
    tpu.vector_store %arg4[%278, %c0_80, %c0_81], %281 {strides = array<i32>} : memref<8x2x32xf32, #tpu.memory_space<vmem>>, vector<1x2x32xf32>,
    %c8_i32 = arith.constant 8 : i32
    %c0_82 = arith.constant 0 : index
    %c0_83 = arith.constant 0 : index
    %282 = vector.load %arg5[%c0_82, %c0_83] : memref<2x32xf32, #tpu.memory_space<vmem>>, vector<2x32xf32>
    tpu.vector_store %arg5[%c0_82, %c0_83], %277 {strides = array<i32>} : memref<2x32xf32, #tpu.memory_space<vmem>>, vector<2x32xf32>,
    %c0_84 = arith.constant 0 : index
    %c0_85 = arith.constant 0 : index
    %283 = vector.load %arg6[%c0_84, %c0_85] : memref<2x32xf32, #tpu.memory_space<vmem>>, vector<2x32xf32>
    tpu.vector_store %arg6[%c0_84, %c0_85], %275 {strides = array<i32>} : memref<2x32xf32, #tpu.memory_space<vmem>>, vector<2x32xf32>,
    return
  }
}

</mosaic_0001>

<llo_original>
// kernel: decoder_forward.5
$region0: #{decoder_forward.5}
  #allocation0 [shape = 'u32[]', space=smem, size = 0x4, offset = 0x4, fixed_abs, tag = 'smem constant byte address 0x4 - core index']
  #allocation1 [shape = 'u32[144,128]{1,0:T(1,128)}', space=vmem, size = 0x12000, scoped, tag = 'internal scratch']
  %s0 = inlined_call_operand.vmem [shape: f32[16,32], index: 0, kind: input, shape index: {}]
  %s1 = inlined_call_operand.vmem [shape: f32[32,16], index: 1, kind: input, shape index: {}]
  %s2 = inlined_call_operand.vmem [shape: f32[1,16], index: 2, kind: input, shape index: {}]
  %s3 = inlined_call_operand.hbm [shape: f32[16,16], index: 3, kind: output, shape index: {}]
  %s4 = sld [smem:[#allocation0]]
  $region22: #{decoder_forward.5} parent=0
    _
  %s6 = ssub.s32 1, %s4
  %s7 = scalar_select 0, %s6, %s4
  $region1: #{decoder_forward.5} parent=0
    #allocation2 [shape = 'u8[8192]{0}', space=vmem, size = 0x2000, scoped, tag = 'output window, operand 0, single buffered']
    #allocation3 [shape = 's32[1]{0}', space=sflag, size = 0x4, scoped, tag = 'scoped memory for decoder_forward.5']
    %8 = vsyncpa [#allocation3], 0
    // Predicated region
    $region2: #{decoder_forward.5} parent=1 // pred_check
      _
    $region3: #{decoder_forward.5} parent=1 // pred_check_branch
      %10 = sbr.rel (0) target = $region5
    $region4: #{decoder_forward.5} parent=1 // pred_region
      _
    $region5: #{decoder_forward.5} parent=1 // pred_fallthru
      _
    // Predicated region
    $region6: #{decoder_forward.5} parent=1 // pred_check
      _
    $region7: #{decoder_forward.5} parent=1 // pred_check_branch
      %12 = sbr.rel (0) target = $region9
    $region8: #{decoder_forward.5} parent=1 // pred_region
      _
    $region9: #{decoder_forward.5} parent=1 // pred_fallthru
      _
    // Predicated region
    $region10: #{decoder_forward.5} parent=1 // pred_check
      _
    $region11: #{decoder_forward.5} parent=1 // pred_check_branch
      %14 = sbr.rel (0) target = $region13
    $region12: #{decoder_forward.5} parent=1 // pred_region
      _
    $region13: #{decoder_forward.5} parent=1 // pred_fallthru
      _
    %v15 = vld [vmem:[%s0] sm:$0xff]
    %v16 = vld [vmem:[%s0 + $0x8] sm:$0xff]
    %v17 = vld [vmem:[%s1] sm:$0xff]
    %v18 = vld [vmem:[%s1 + $0x8] sm:$0xff]
    %v19 = vld [vmem:[%s1 + $0x10] sm:$0xff]
    %v20 = vld [vmem:[%s1 + $0x18] sm:$0xff]
    %v21 = vld [vmem:[%s2] sm:$0x1]
    %v23 = vlaneseq
    %v24 = vshrl.u32 %v23, 7
    %v25 = vsub.s32 0, %v24
    %v26 = vrot.slane %v21, %v25
    %vm28 = vcmask 261120
    %v30 = vsel %vm28, %v15, 0
    %v33 = vsel %vm28, %v16, 0
    %35 = vmatprep.subr.mxu0 0.0
    %36 = vmatpush1.msra.mxu0 0.0
    %37 = vmatprep.subr.mxu0 0.0
    %38 = vmatpush1.msra.mxu0 0.0
    %39 = vmatprep.subr.mxu0 0.0
    %40 = vmatpush1.msra.mxu0 0.0
    %41 = vmatprep.subr.mxu0 0.0
    %42 = vmatpush1.msra.mxu0 0.0
    %43 = vmatprep.subr.mxu0 0.0
    %44 = vmatpush1.msra.mxu0 0.0
    %45 = vmatprep.subr.mxu0 0.0
    %46 = vmatpush1.msra.mxu0 0.0
    %47 = vmatprep.subr.mxu0 0.0
    %48 = vmatpush1.msra.mxu0 0.0
    %49 = vmatprep.subr.mxu0 0.0
    %50 = vmatpush1.msra.mxu0 0.0
    %51 = vmatprep.subr.mxu0 0.0
    %52 = vmatpush1.msra.mxu0 0.0
    %53 = vmatprep.subr.mxu0 0.0
    %54 = vmatpush1.msra.mxu0 0.0
    %55 = vmatprep.subr.mxu0 0.0
    %56 = vmatpush1.msra.mxu0 0.0
    %57 = vmatprep.subr.mxu0 0.0
    %58 = vmatpush1.msra.mxu0 0.0
    %59 = vmatprep.subr.mxu0 0.0
    %60 = vmatpush1.msra.mxu0 %v20
    %61 = vmatprep.subr.mxu0 0.0
    %62 = vmatpush1.msra.mxu0 %v19
    %63 = vmatprep.subr.mxu0 0.0
    %64 = vmatpush1.msra.mxu0 %v18
    %65 = vmatprep.subr.mxu0 0.0
    %66 = vmatpush1.msra.mxu0 %v17
    %67 = vmatprep.subr.mxu0 0.0
    %68 = vmatpush2.msra.mxu0 0.0
    %69 = vmatprep.subr.mxu0 0.0
    %70 = vmatpush2.msra.mxu0 0.0
    %71 = vmatprep.subr.mxu0 0.0
    %72 = vmatpush2.msra.mxu0 0.0
    %73 = vmatprep.subr.mxu0 0.0
    %74 = vmatpush2.msra.mxu0 0.0
    %75 = vmatprep.subr.mxu0 0.0
    %76 = vmatpush2.msra.mxu0 0.0
    %77 = vmatprep.subr.mxu0 0.0
    %78 = vmatpush2.msra.mxu0 0.0
    %79 = vmatprep.subr.mxu0 0.0
    %80 = vmatpush2.msra.mxu0 0.0
    %81 = vmatprep.subr.mxu0 0.0
    %82 = vmatpush2.msra.mxu0 0.0
    %83 = vmatprep.subr.mxu0 0.0
    %84 = vmatpush2.msra.mxu0 0.0
    %85 = vmatprep.subr.mxu0 0.0
    %86 = vmatpush2.msra.mxu0 0.0
    %87 = vmatprep.subr.mxu0 0.0
    %88 = vmatpush2.msra.mxu0 0.0
    %89 = vmatprep.subr.mxu0 0.0
    %90 = vmatpush2.msra.mxu0 0.0
    %91 = vmatprep.subr.mxu0 0.0
    %92 = vmatpush2.msra.mxu0 0.0
    %93 = vmatprep.subr.mxu0 0.0
    %94 = vmatpush2.msra.mxu0 0.0
    %95 = vmatprep.subr.mxu0 0.0
    %96 = vmatpush2.msra.mxu0 0.0
    %97 = vmatprep.subr.mxu0 0.0
    %98 = vmatpush2.msra.mxu0 0.0
    %99 = vmatprep.mubr.f32.mxu0 0.0
    %100 = vmatmul.mubr.f32.gmra.mxu0 %v30
    %v101 = vpop.f32.mrf.mxu0
    %v102 = vadd.f32 %v26, %v101
    %v103 = vpop.f32.mrf.mxu0
    %104 = vmatprep.mubr.f32.mxu0 0.0
    %105 = vmatmul.mubr.f32.gmra.mxu0 %v33
    %v106 = vpop.f32.mrf.mxu0
    %v107 = vadd.f32 %v26, %v106
    %v108 = vpop.f32.mrf.mxu0
    %109 = vdwg.mxu0
    %vm110 = vcmask 130048
    %111 = vst.msk [vmem:[#allocation2] sm:$0xff] %vm110, %v102
    %112 = vst.msk [vmem:[#allocation2 + $0x8] sm:$0xff] %vm110, %v107
    // Predicated region
    $region14: #{decoder_forward.5} parent=1 // pred_check
      _
    $region15: #{decoder_forward.5} parent=1 // pred_check_branch
      %114 = sbr.rel (0) target = $region17
    $region16: #{decoder_forward.5} parent=1 // pred_region
      %s116 = ssub.s32 256, 256
      %117 = vsyncadd [#allocation3], %s116
      %s118 = sshll.u32 [#allocation2], 4
      %s119 = int_to_ptr.vmem [resolvable:$true] %s118
      %124 = dma.vmem_to_hbm [thread:$0]  %s119, 256, %s3, [#allocation3], 128, 128, 8
    $region17: #{decoder_forward.5} parent=1 // pred_fallthru
      _
    // Predicated region
    $region18: #{decoder_forward.5} parent=1 // pred_check
      _
    $region19: #{decoder_forward.5} parent=1 // pred_check_branch
      %126 = sbr.rel (0) target = $region21
    $region20: #{decoder_forward.5} parent=1 // pred_region
      %127 = dma.done [#allocation3], 256
    $region21: #{decoder_forward.5} parent=1 // pred_fallthru
      _
    %128 = vsyncpa [#allocation3], 1

// kernel: decoder_forward.3
$region0: #{decoder_forward.3}
  #allocation0 [shape = 'u32[]', space=smem, size = 0x4, offset = 0x4, fixed_abs, tag = 'smem constant byte address 0x4 - core index']
  #allocation1 [shape = 'u32[144,128]{1,0:T(1,128)}', space=vmem, size = 0x12000, scoped, tag = 'internal scratch']
  %s0 = inlined_call_operand.vmem [shape: f32[8,2,128], index: 0, kind: input, shape index: {}]
  %s1 = inlined_call_operand.vmem [shape: f32[2,32], index: 1, kind: input, shape index: {}, may-alias: {1,2}]
  %s2 = inlined_call_operand.vmem [shape: f32[2,32], index: 2, kind: input, shape index: {}, may-alias: {1,2}]
  %s3 = inlined_call_operand.vmem [shape: f32[32,128], index: 3, kind: input, shape index: {}]
  %s4 = inlined_call_operand.vmem [shape: f32[8,2,32], index: 4, kind: output, shape index: {0}]
  %s5 = inlined_call_operand.vmem [shape: f32[2,32], index: 5, kind: output, shape index: {1}]
  %s6 = inlined_call_operand.vmem [shape: f32[2,32], index: 6, kind: output, shape index: {2}]
  %7 = xla_tuple %s4, %s5, %s6
  %s8 = sld [smem:[#allocation0]]
  $region42: #{decoder_forward.3} parent=0
    _
  %s10 = ssub.s32 1, %s8
  %s11 = scalar_select 0, %s10, %s8
  // Predicated region
  $region2: #{decoder_forward.3} parent=0 // pred_check
    _
  $region3: #{decoder_forward.3} parent=0 // pred_check_branch
    %13 = sbr.rel (0) target = $region5
  $region4: #{decoder_forward.3} parent=0 // pred_region
    _
  $region5: #{decoder_forward.3} parent=0 // pred_fallthru
    _
  // Predicated region
  $region6: #{decoder_forward.3} parent=0 // pred_check
    _
  $region7: #{decoder_forward.3} parent=0 // pred_check_branch
    %15 = sbr.rel (0) target = $region9
  $region8: #{decoder_forward.3} parent=0 // pred_region
    _
  $region9: #{decoder_forward.3} parent=0 // pred_fallthru
    _
  // Predicated region
  $region10: #{decoder_forward.3} parent=0 // pred_check
    _
  $region11: #{decoder_forward.3} parent=0 // pred_check_branch
    %17 = sbr.rel (0) target = $region13
  $region12: #{decoder_forward.3} parent=0 // pred_region
    _
  $region13: #{decoder_forward.3} parent=0 // pred_fallthru
    _
  // Predicated region
  $region14: #{decoder_forward.3} parent=0 // pred_check
    _
  $region15: #{decoder_forward.3} parent=0 // pred_check_branch
    %19 = sbr.rel (0) target = $region17
  $region16: #{decoder_forward.3} parent=0 // pred_region
    _
  $region17: #{decoder_forward.3} parent=0 // pred_fallthru
    _
  %v20 = vld [vmem:[%s1] sm:$0x3]
  %v21 = vld [vmem:[%s2] sm:$0x3]
  %v22 = vld [vmem:[%s0] sm:$0x3]
  %v23 = vld [vmem:[%s3] sm:$0xff]
  %v24 = vld [vmem:[%s3 + $0x8] sm:$0xff]
  %v25 = vld [vmem:[%s3 + $0x10] sm:$0xff]
  %v26 = vld [vmem:[%s3 + $0x18] sm:$0xff]
  %vm27 = vcmask 261120
  %v29 = vsel %vm27, %v20, 0
  %31 = vmatprep.subr.mxu0 0.0
  %32 = vmatpush1.msra.mxu0 0.0
  %33 = vmatprep.subr.mxu0 0.0
  %34 = vmatpush1.msra.mxu0 0.0
  %35 = vmatprep.subr.mxu0 0.0
  %36 = vmatpush1.msra.mxu0 0.0
  %37 = vmatprep.subr.mxu0 0.0
  %38 = vmatpush1.msra.mxu0 0.0
  %39 = vmatprep.subr.mxu0 0.0
  %40 = vmatpush1.msra.mxu0 0.0
  %41 = vmatprep.subr.mxu0 0.0
  %42 = vmatpush1.msra.mxu0 0.0
  %43 = vmatprep.subr.mxu0 0.0
  %44 = vmatpush1.msra.mxu0 0.0
  %45 = vmatprep.subr.mxu0 0.0
  %46 = vmatpush1.msra.mxu0 0.0
  %47 = vmatprep.subr.mxu0 0.0
  %48 = vmatpush1.msra.mxu0 0.0
  %49 = vmatprep.subr.mxu0 0.0
  %50 = vmatpush1.msra.mxu0 0.0
  %51 = vmatprep.subr.mxu0 0.0
  %52 = vmatpush1.msra.mxu0 0.0
  %53 = vmatprep.subr.mxu0 0.0
  %54 = vmatpush1.msra.mxu0 0.0
  %55 = vmatprep.subr.mxu0 0.0
  %56 = vmatpush1.msra.mxu0 %v26
  %57 = vmatprep.subr.mxu0 0.0
  %58 = vmatpush1.msra.mxu0 %v25
  %59 = vmatprep.subr.mxu0 0.0
  %60 = vmatpush1.msra.mxu0 %v24
  %61 = vmatprep.subr.mxu0 0.0
  %62 = vmatpush1.msra.mxu0 %v23
  %63 = vmatprep.subr.mxu0 0.0
  %64 = vmatpush2.msra.mxu0 0.0
  %65 = vmatprep.subr.mxu0 0.0
  %66 = vmatpush2.msra.mxu0 0.0
  %67 = vmatprep.subr.mxu0 0.0
  %68 = vmatpush2.msra.mxu0 0.0
  %69 = vmatprep.subr.mxu0 0.0
  %70 = vmatpush2.msra.mxu0 0.0
  %71 = vmatprep.subr.mxu0 0.0
  %72 = vmatpush2.msra.mxu0 0.0
  %73 = vmatprep.subr.mxu0 0.0
  %74 = vmatpush2.msra.mxu0 0.0
  %75 = vmatprep.subr.mxu0 0.0
  %76 = vmatpush2.msra.mxu0 0.0
  %77 = vmatprep.subr.mxu0 0.0
  %78 = vmatpush2.msra.mxu0 0.0
  %79 = vmatprep.subr.mxu0 0.0
  %80 = vmatpush2.msra.mxu0 0.0
  %81 = vmatprep.subr.mxu0 0.0
  %82 = vmatpush2.msra.mxu0 0.0
  %83 = vmatprep.subr.mxu0 0.0
  %84 = vmatpush2.msra.mxu0 0.0
  %85 = vmatprep.subr.mxu0 0.0
  %86 = vmatpush2.msra.mxu0 0.0
  %87 = vmatprep.subr.mxu0 0.0
  %88 = vmatpush2.msra.mxu0 0.0
  %89 = vmatprep.subr.mxu0 0.0
  %90 = vmatpush2.msra.mxu0 0.0
  %91 = vmatprep.subr.mxu0 0.0
  %92 = vmatpush2.msra.mxu0 0.0
  %93 = vmatprep.subr.mxu0 0.0
  %94 = vmatpush2.msra.mxu0 0.0
  %95 = vmatprep.mubr.f32.mxu0 0.0
  %96 = vmatmul.mubr.f32.gmra.mxu0 %v29
  %v97 = vpop.f32.mrf.mxu0
  %v98 = vadd.f32 0.0, %v97
  %v99 = vpop.f32.mrf.mxu0
  %100 = vdwg.mxu0
  %v101 = vadd.f32 %v22, %v98
  %v102 = vxor.u32 %v101, 2147483648
  %v103 = vmul.f32 %v102, 1.442695
  %v104 = vpow.pop %v103
  %v105 = vadd.f32 %v104, 1.0
  %v106 = vrcp.pop %v105
  %v107 = vmul.f32 1.0, %v106
  %v108 = vtanh.pop %v101
  %110 = vrot.lane.b32.xlu0 %v21, 32
  %v111 = vpop.permute.xlu0 %110
  %v113 = vmul.f32 %v107, %v111
  %115 = vrot.lane.b32.xlu0 %v108, 64
  %v116 = vpop.permute.xlu0 %115
  %v118 = vmul.f32 %v107, %v116
  %120 = vrot.lane.b32.xlu0 %v118, 32
  %v121 = vpop.permute.xlu0 %120
  %v123 = vadd.f32 %v113, %v121
  %v124 = vtanh.pop %v123
  %126 = vrot.lane.b32.xlu0 %v124, 64
  %v127 = vpop.permute.xlu0 %126
  %v129 = vmul.f32 %v107, %v127
  %131 = vrot.lane.b32.xlu0 %v129, 32
  %v132 = vpop.permute.xlu0 %131
  %vm134 = vcmask 254976
  %135 = vst.msk [vmem:[%s4] sm:$0x3] %vm134, %v132
  %s136 = scalar_lea.vmem %s0, 2
  %v137 = vld [vmem:[%s136] sm:$0x3]
  %v138 = vld [vmem:[%s3] sm:$0xff]
  %v139 = vld [vmem:[%s3 + $0x8] sm:$0xff]
  %v140 = vld [vmem:[%s3 + $0x10] sm:$0xff]
  %v141 = vld [vmem:[%s3 + $0x18] sm:$0xff]
  %v142 = vsel %vm27, %v132, 0
  %144 = vmatprep.subr.mxu0 0.0
  %145 = vmatpush1.msra.mxu0 0.0
  %146 = vmatprep.subr.mxu0 0.0
  %147 = vmatpush1.msra.mxu0 0.0
  %148 = vmatprep.subr.mxu0 0.0
  %149 = vmatpush1.msra.mxu0 0.0
  %150 = vmatprep.subr.mxu0 0.0
  %151 = vmatpush1.msra.mxu0 0.0
  %152 = vmatprep.subr.mxu0 0.0
  %153 = vmatpush1.msra.mxu0 0.0
  %154 = vmatprep.subr.mxu0 0.0
  %155 = vmatpush1.msra.mxu0 0.0
  %156 = vmatprep.subr.mxu0 0.0
  %157 = vmatpush1.msra.mxu0 0.0
  %158 = vmatprep.subr.mxu0 0.0
  %159 = vmatpush1.msra.mxu0 0.0
  %160 = vmatprep.subr.mxu0 0.0
  %161 = vmatpush1.msra.mxu0 0.0
  %162 = vmatprep.subr.mxu0 0.0
  %163 = vmatpush1.msra.mxu0 0.0
  %164 = vmatprep.subr.mxu0 0.0
  %165 = vmatpush1.msra.mxu0 0.0
  %166 = vmatprep.subr.mxu0 0.0
  %167 = vmatpush1.msra.mxu0 0.0
  %168 = vmatprep.subr.mxu0 0.0
  %169 = vmatpush1.msra.mxu0 %v141
  %170 = vmatprep.subr.mxu0 0.0
  %171 = vmatpush1.msra.mxu0 %v140
  %172 = vmatprep.subr.mxu0 0.0
  %173 = vmatpush1.msra.mxu0 %v139
  %174 = vmatprep.subr.mxu0 0.0
  %175 = vmatpush1.msra.mxu0 %v138
  %176 = vmatprep.subr.mxu0 0.0
  %177 = vmatpush2.msra.mxu0 0.0
  %178 = vmatprep.subr.mxu0 0.0
  %179 = vmatpush2.msra.mxu0 0.0
  %180 = vmatprep.subr.mxu0 0.0
  %181 = vmatpush2.msra.mxu0 0.0
  %182 = vmatprep.subr.mxu0 0.0
  %183 = vmatpush2.msra.mxu0 0.0
  %184 = vmatprep.subr.mxu0 0.0
  %185 = vmatpush2.msra.mxu0 0.0
  %186 = vmatprep.subr.mxu0 0.0
  %187 = vmatpush2.msra.mxu0 0.0
  %188 = vmatprep.subr.mxu0 0.0
  %189 = vmatpush2.msra.mxu0 0.0
  %190 = vmatprep.subr.mxu0 0.0
  %191 = vmatpush2.msra.mxu0 0.0
  %192 = vmatprep.subr.mxu0 0.0
  %193 = vmatpush2.msra.mxu0 0.0
  %194 = vmatprep.subr.mxu0 0.0
  %195 = vmatpush2.msra.mxu0 0.0
  %196 = vmatprep.subr.mxu0 0.0
  %197 = vmatpush2.msra.mxu0 0.0
  %198 = vmatprep.subr.mxu0 0.0
  %199 = vmatpush2.msra.mxu0 0.0
  %200 = vmatprep.subr.mxu0 0.0
  %201 = vmatpush2.msra.mxu0 0.0
  %202 = vmatprep.subr.mxu0 0.0
  %203 = vmatpush2.msra.mxu0 0.0
  %204 = vmatprep.subr.mxu0 0.0
  %205 = vmatpush2.msra.mxu0 0.0
  %206 = vmatprep.subr.mxu0 0.0
  %207 = vmatpush2.msra.mxu0 0.0
  %208 = vmatprep.mubr.f32.mxu0 0.0
  %209 = vmatmul.mubr.f32.gmra.mxu0 %v142
  %v210 = vpop.f32.mrf.mxu0
  %v211 = vadd.f32 0.0, %v210
  %v212 = vpop.f32.mrf.mxu0
  %213 = vdwg.mxu0
  %v214 = vadd.f32 %v137, %v211
  %v215 = vxor.u32 %v214, 2147483648
  %v216 = vmul.f32 %v215, 1.442695
  %v217 = vpow.pop %v216
  %v218 = vadd.f32 %v217, 1.0
  %v219 = vrcp.pop %v218
  %v220 = vmul.f32 1.0, %v219
  %v221 = vtanh.pop %v214
  %v222 = vmul.f32 %v220, %v123
  %224 = vrot.lane.b32.xlu0 %v221, 64
  %v225 = vpop.permute.xlu0 %224
  %v227 = vmul.f32 %v220, %v225
  %229 = vrot.lane.b32.xlu0 %v227, 32
  %v230 = vpop.permute.xlu0 %229
  %v232 = vadd.f32 %v222, %v230
  %v233 = vtanh.pop %v232
  %235 = vrot.lane.b32.xlu0 %v233, 64
  %v236 = vpop.permute.xlu0 %235
  %v238 = vmul.f32 %v220, %v236
  %240 = vrot.lane.b32.xlu0 %v238, 32
  %v241 = vpop.permute.xlu0 %240
  %s243 = scalar_lea.vmem %s4, 2
  %244 = vst.msk [vmem:[%s243] sm:$0x3] %vm134, %v241
  %s245 = scalar_lea.vmem %s0, 4
  %v246 = vld [vmem:[%s245] sm:$0x3]
  %v247 = vld [vmem:[%s3] sm:$0xff]
  %v248 = vld [vmem:[%s3 + $0x8] sm:$0xff]
  %v249 = vld [vmem:[%s3 + $0x10] sm:$0xff]
  %v250 = vld [vmem:[%s3 + $0x18] sm:$0xff]
  %v251 = vsel %vm27, %v241, 0
  %253 = vmatprep.subr.mxu0 0.0
  %254 = vmatpush1.msra.mxu0 0.0
  %255 = vmatprep.subr.mxu0 0.0
  %256 = vmatpush1.msra.mxu0 0.0
  %257 = vmatprep.subr.mxu0 0.0
  %258 = vmatpush1.msra.mxu0 0.0
  %259 = vmatprep.subr.mxu0 0.0
  %260 = vmatpush1.msra.mxu0 0.0
  %261 = vmatprep.subr.mxu0 0.0
  %262 = vmatpush1.msra.mxu0 0.0
  %263 = vmatprep.subr.mxu0 0.0
  %264 = vmatpush1.msra.mxu0 0.0
  %265 = vmatprep.subr.mxu0 0.0
  %266 = vmatpush1.msra.mxu0 0.0
  %267 = vmatprep.subr.mxu0 0.0
  %268 = vmatpush1.msra.mxu0 0.0
  %269 = vmatprep.subr.mxu0 0.0
  %270 = vmatpush1.msra.mxu0 0.0
  %271 = vmatprep.subr.mxu0 0.0
  %272 = vmatpush1.msra.mxu0 0.0
  %273 = vmatprep.subr.mxu0 0.0
  %274 = vmatpush1.msra.mxu0 0.0
  %275 = vmatprep.subr.mxu0 0.0
  %276 = vmatpush1.msra.mxu0 0.0
  %277 = vmatprep.subr.mxu0 0.0
  %278 = vmatpush1.msra.mxu0 %v250
  %279 = vmatprep.subr.mxu0 0.0
  %280 = vmatpush1.msra.mxu0 %v249
  %281 = vmatprep.subr.mxu0 0.0
  %282 = vmatpush1.msra.mxu0 %v248
  %283 = vmatprep.subr.mxu0 0.0
  %284 = vmatpush1.msra.mxu0 %v247
  %285 = vmatprep.subr.mxu0 0.0
  %286 = vmatpush2.msra.mxu0 0.0
  %287 = vmatprep.subr.mxu0 0.0
  %288 = vmatpush2.msra.mxu0 0.0
  %289 = vmatprep.subr.mxu0 0.0
  %290 = vmatpush2.msra.mxu0 0.0
  %291 = vmatprep.subr.mxu0 0.0
  %292 = vmatpush2.msra.mxu0 0.0
  %293 = vmatprep.subr.mxu0 0.0
  %294 = vmatpush2.msra.mxu0 0.0
  %295 = vmatprep.subr.mxu0 0.0
  %296 = vmatpush2.msra.mxu0 0.0
  %297 = vmatprep.subr.mxu0 0.0
  %298 = vmatpush2.msra.mxu0 0.0
  %299 = vmatprep.subr.mxu0 0.0
  %300 = vmatpush2.msra.mxu0 0.0
  %301 = vmatprep.subr.mxu0 0.0
  %302 = vmatpush2.msra.mxu0 0.0
  %303 = vmatprep.subr.mxu0 0.0
  %304 = vmatpush2.msra.mxu0 0.0
  %305 = vmatprep.subr.mxu0 0.0
  %306 = vmatpush2.msra.mxu0 0.0
  %307 = vmatprep.subr.mxu0 0.0
  %308 = vmatpush2.msra.mxu0 0.0
  %309 = vmatprep.subr.mxu0 0.0
  %310 = vmatpush2.msra.mxu0 0.0
  %311 = vmatprep.subr.mxu0 0.0
  %312 = vmatpush2.msra.mxu0 0.0
  %313 = vmatprep.subr.mxu0 0.0
  %314 = vmatpush2.msra.mxu0 0.0
  %315 = vmatprep.subr.mxu0 0.0
  %316 = vmatpush2.msra.mxu0 0.0
  %317 = vmatprep.mubr.f32.mxu0 0.0
  %318 = vmatmul.mubr.f32.gmra.mxu0 %v251
  %v319 = vpop.f32.mrf.mxu0
  %v320 = vadd.f32 0.0, %v319
  %v321 = vpop.f32.mrf.mxu0
  %322 = vdwg.mxu0
  %v323 = vadd.f32 %v246, %v320
  %v324 = vxor.u32 %v323, 2147483648
  %v325 = vmul.f32 %v324, 1.442695
  %v326 = vpow.pop %v325
  %v327 = vadd.f32 %v326, 1.0
  %v328 = vrcp.pop %v327
  %v329 = vmul.f32 1.0, %v328
  %v330 = vtanh.pop %v323
  %v331 = vmul.f32 %v329, %v232
  %333 = vrot.lane.b32.xlu0 %v330, 64
  %v334 = vpop.permute.xlu0 %333
  %v336 = vmul.f32 %v329, %v334
  %338 = vrot.lane.b32.xlu0 %v336, 32
  %v339 = vpop.permute.xlu0 %338
  %v341 = vadd.f32 %v331, %v339
  %v342 = vtanh.pop %v341
  %344 = vrot.lane.b32.xlu0 %v342, 64
  %v345 = vpop.permute.xlu0 %344
  %v347 = vmul.f32 %v329, %v345
  %349 = vrot.lane.b32.xlu0 %v347, 32
  %v350 = vpop.permute.xlu0 %349
  %s352 = scalar_lea.vmem %s4, 4
  %353 = vst.msk [vmem:[%s352] sm:$0x3] %vm134, %v350
  %s354 = scalar_lea.vmem %s0, 6
  %v355 = vld [vmem:[%s354] sm:$0x3]
  %v356 = vld [vmem:[%s3] sm:$0xff]
  %v357 = vld [vmem:[%s3 + $0x8] sm:$0xff]
  %v358 = vld [vmem:[%s3 + $0x10] sm:$0xff]
  %v359 = vld [vmem:[%s3 + $0x18] sm:$0xff]
  %v360 = vsel %vm27, %v350, 0
  %362 = vmatprep.subr.mxu0 0.0
  %363 = vmatpush1.msra.mxu0 0.0
  %364 = vmatprep.subr.mxu0 0.0
  %365 = vmatpush1.msra.mxu0 0.0
  %366 = vmatprep.subr.mxu0 0.0
  %367 = vmatpush1.msra.mxu0 0.0
  %368 = vmatprep.subr.mxu0 0.0
  %369 = vmatpush1.msra.mxu0 0.0
  %370 = vmatprep.subr.mxu0 0.0
  %371 = vmatpush1.msra.mxu0 0.0
  %372 = vmatprep.subr.mxu0 0.0
  %373 = vmatpush1.msra.mxu0 0.0
  %374 = vmatprep.subr.mxu0 0.0
  %375 = vmatpush1.msra.mxu0 0.0
  %376 = vmatprep.subr.mxu0 0.0
  %377 = vmatpush1.msra.mxu0 0.0
  %378 = vmatprep.subr.mxu0 0.0
  %379 = vmatpush1.msra.mxu0 0.0
  %380 = vmatprep.subr.mxu0 0.0
  %381 = vmatpush1.msra.mxu0 0.0
  %382 = vmatprep.subr.mxu0 0.0
  %383 = vmatpush1.msra.mxu0 0.0
  %384 = vmatprep.subr.mxu0 0.0
  %385 = vmatpush1.msra.mxu0 0.0
  %386 = vmatprep.subr.mxu0 0.0
  %387 = vmatpush1.msra.mxu0 %v359
  %388 = vmatprep.subr.mxu0 0.0
  %389 = vmatpush1.msra.mxu0 %v358
  %390 = vmatprep.subr.mxu0 0.0
  %391 = vmatpush1.msra.mxu0 %v357
  %392 = vmatprep.subr.mxu0 0.0
  %393 = vmatpush1.msra.mxu0 %v356
  %394 = vmatprep.subr.mxu0 0.0
  %395 = vmatpush2.msra.mxu0 0.0
  %396 = vmatprep.subr.mxu0 0.0
  %397 = vmatpush2.msra.mxu0 0.0
  %398 = vmatprep.subr.mxu0 0.0
  %399 = vmatpush2.msra.mxu0 0.0
  %400 = vmatprep.subr.mxu0 0.0
  %401 = vmatpush2.msra.mxu0 0.0
  %402 = vmatprep.subr.mxu0 0.0
  %403 = vmatpush2.msra.mxu0 0.0
  %404 = vmatprep.subr.mxu0 0.0
  %405 = vmatpush2.msra.mxu0 0.0
  %406 = vmatprep.subr.mxu0 0.0
  %407 = vmatpush2.msra.mxu0 0.0
  %408 = vmatprep.subr.mxu0 0.0
  %409 = vmatpush2.msra.mxu0 0.0
  %410 = vmatprep.subr.mxu0 0.0
  %411 = vmatpush2.msra.mxu0 0.0
  %412 = vmatprep.subr.mxu0 0.0
  %413 = vmatpush2.msra.mxu0 0.0
  %414 = vmatprep.subr.mxu0 0.0
  %415 = vmatpush2.msra.mxu0 0.0
  %416 = vmatprep.subr.mxu0 0.0
  %417 = vmatpush2.msra.mxu0 0.0
  %418 = vmatprep.subr.mxu0 0.0
  %419 = vmatpush2.msra.mxu0 0.0
  %420 = vmatprep.subr.mxu0 0.0
  %421 = vmatpush2.msra.mxu0 0.0
  %422 = vmatprep.subr.mxu0 0.0
  %423 = vmatpush2.msra.mxu0 0.0
  %424 = vmatprep.subr.mxu0 0.0
  %425 = vmatpush2.msra.mxu0 0.0
  %426 = vmatprep.mubr.f32.mxu0 0.0
  %427 = vmatmul.mubr.f32.gmra.mxu0 %v360
  %v428 = vpop.f32.mrf.mxu0
  %v429 = vadd.f32 0.0, %v428
  %v430 = vpop.f32.mrf.mxu0
  %431 = vdwg.mxu0
  %v432 = vadd.f32 %v355, %v429
  %v433 = vxor.u32 %v432, 2147483648
  %v434 = vmul.f32 %v433, 1.442695
  %v435 = vpow.pop %v434
  %v436 = vadd.f32 %v435, 1.0
  %v437 = vrcp.pop %v436
  %v438 = vmul.f32 1.0, %v437
  %v439 = vtanh.pop %v432
  %v440 = vmul.f32 %v438, %v341
  %442 = vrot.lane.b32.xlu0 %v439, 64
  %v443 = vpop.permute.xlu0 %442
  %v445 = vmul.f32 %v438, %v443
  %447 = vrot.lane.b32.xlu0 %v445, 32
  %v448 = vpop.permute.xlu0 %447
  %v450 = vadd.f32 %v440, %v448
  %v451 = vtanh.pop %v450
  %453 = vrot.lane.b32.xlu0 %v451, 64
  %v454 = vpop.permute.xlu0 %453
  %v456 = vmul.f32 %v438, %v454
  %458 = vrot.lane.b32.xlu0 %v456, 32
  %v459 = vpop.permute.xlu0 %458
  %s461 = scalar_lea.vmem %s4, 6
  %462 = vst.msk [vmem:[%s461] sm:$0x3] %vm134, %v459
  %s463 = scalar_lea.vmem %s0, 8
  %v464 = vld [vmem:[%s463] sm:$0x3]
  %v465 = vld [vmem:[%s3] sm:$0xff]
  %v466 = vld [vmem:[%s3 + $0x8] sm:$0xff]
  %v467 = vld [vmem:[%s3 + $0x10] sm:$0xff]
  %v468 = vld [vmem:[%s3 + $0x18] sm:$0xff]
  %v469 = vsel %vm27, %v459, 0
  %471 = vmatprep.subr.mxu0 0.0
  %472 = vmatpush1.msra.mxu0 0.0
  %473 = vmatprep.subr.mxu0 0.0
  %474 = vmatpush1.msra.mxu0 0.0
  %475 = vmatprep.subr.mxu0 0.0
  %476 = vmatpush1.msra.mxu0 0.0
  %477 = vmatprep.subr.mxu0 0.0
  %478 = vmatpush1.msra.mxu0 0.0
  %479 = vmatprep.subr.mxu0 0.0
  %480 = vmatpush1.msra.mxu0 0.0
  %481 = vmatprep.subr.mxu0 0.0
  %482 = vmatpush1.msra.mxu0 0.0
  %483 = vmatprep.subr.mxu0 0.0
  %484 = vmatpush1.msra.mxu0 0.0
  %485 = vmatprep.subr.mxu0 0.0
  %486 = vmatpush1.msra.mxu0 0.0
  %487 = vmatprep.subr.mxu0 0.0
  %488 = vmatpush1.msra.mxu0 0.0
  %489 = vmatprep.subr.mxu0 0.0
  %490 = vmatpush1.msra.mxu0 0.0
  %491 = vmatprep.subr.mxu0 0.0
  %492 = vmatpush1.msra.mxu0 0.0
  %493 = vmatprep.subr.mxu0 0.0
  %494 = vmatpush1.msra.mxu0 0.0
  %495 = vmatprep.subr.mxu0 0.0
  %496 = vmatpush1.msra.mxu0 %v468
  %497 = vmatprep.subr.mxu0 0.0
  %498 = vmatpush1.msra.mxu0 %v467
  %499 = vmatprep.subr.mxu0 0.0
  %500 = vmatpush1.msra.mxu0 %v466
  %501 = vmatprep.subr.mxu0 0.0
  %502 = vmatpush1.msra.mxu0 %v465
  %503 = vmatprep.subr.mxu0 0.0
  %504 = vmatpush2.msra.mxu0 0.0
  %505 = vmatprep.subr.mxu0 0.0
  %506 = vmatpush2.msra.mxu0 0.0
  %507 = vmatprep.subr.mxu0 0.0
  %508 = vmatpush2.msra.mxu0 0.0
  %509 = vmatprep.subr.mxu0 0.0
  %510 = vmatpush2.msra.mxu0 0.0
  %511 = vmatprep.subr.mxu0 0.0
  %512 = vmatpush2.msra.mxu0 0.0
  %513 = vmatprep.subr.mxu0 0.0
  %514 = vmatpush2.msra.mxu0 0.0
  %515 = vmatprep.subr.mxu0 0.0
  %516 = vmatpush2.msra.mxu0 0.0
  %517 = vmatprep.subr.mxu0 0.0
  %518 = vmatpush2.msra.mxu0 0.0
  %519 = vmatprep.subr.mxu0 0.0
  %520 = vmatpush2.msra.mxu0 0.0
  %521 = vmatprep.subr.mxu0 0.0
  %522 = vmatpush2.msra.mxu0 0.0
  %523 = vmatprep.subr.mxu0 0.0
  %524 = vmatpush2.msra.mxu0 0.0
  %525 = vmatprep.subr.mxu0 0.0
  %526 = vmatpush2.msra.mxu0 0.0
  %527 = vmatprep.subr.mxu0 0.0
  %528 = vmatpush2.msra.mxu0 0.0
  %529 = vmatprep.subr.mxu0 0.0
  %530 = vmatpush2.msra.mxu0 0.0
  %531 = vmatprep.subr.mxu0 0.0
  %532 = vmatpush2.msra.mxu0 0.0
  %533 = vmatprep.subr.mxu0 0.0
  %534 = vmatpush2.msra.mxu0 0.0
  %535 = vmatprep.mubr.f32.mxu0 0.0
  %536 = vmatmul.mubr.f32.gmra.mxu0 %v469
  %v537 = vpop.f32.mrf.mxu0
  %v538 = vadd.f32 0.0, %v537
  %v539 = vpop.f32.mrf.mxu0
  %540 = vdwg.mxu0
  %v541 = vadd.f32 %v464, %v538
  %v542 = vxor.u32 %v541, 2147483648
  %v543 = vmul.f32 %v542, 1.442695
  %v544 = vpow.pop %v543
  %v545 = vadd.f32 %v544, 1.0
  %v546 = vrcp.pop %v545
  %v547 = vmul.f32 1.0, %v546
  %v548 = vtanh.pop %v541
  %v549 = vmul.f32 %v547, %v450
  %551 = vrot.lane.b32.xlu0 %v548, 64
  %v552 = vpop.permute.xlu0 %551
  %v554 = vmul.f32 %v547, %v552
  %556 = vrot.lane.b32.xlu0 %v554, 32
  %v557 = vpop.permute.xlu0 %556
  %v559 = vadd.f32 %v549, %v557
  %v560 = vtanh.pop %v559
  %562 = vrot.lane.b32.xlu0 %v560, 64
  %v563 = vpop.permute.xlu0 %562
  %v565 = vmul.f32 %v547, %v563
  %567 = vrot.lane.b32.xlu0 %v565, 32
  %v568 = vpop.permute.xlu0 %567
  %s570 = scalar_lea.vmem %s4, 8
  %571 = vst.msk [vmem:[%s570] sm:$0x3] %vm134, %v568
  %s572 = scalar_lea.vmem %s0, 10
  %v573 = vld [vmem:[%s572] sm:$0x3]
  %v574 = vld [vmem:[%s3] sm:$0xff]
  %v575 = vld [vmem:[%s3 + $0x8] sm:$0xff]
  %v576 = vld [vmem:[%s3 + $0x10] sm:$0xff]
  %v577 = vld [vmem:[%s3 + $0x18] sm:$0xff]
  %v578 = vsel %vm27, %v568, 0
  %580 = vmatprep.subr.mxu0 0.0
  %581 = vmatpush1.msra.mxu0 0.0
  %582 = vmatprep.subr.mxu0 0.0
  %583 = vmatpush1.msra.mxu0 0.0
  %584 = vmatprep.subr.mxu0 0.0
  %585 = vmatpush1.msra.mxu0 0.0
  %586 = vmatprep.subr.mxu0 0.0
  %587 = vmatpush1.msra.mxu0 0.0
  %588 = vmatprep.subr.mxu0 0.0
  %589 = vmatpush1.msra.mxu0 0.0
  %590 = vmatprep.subr.mxu0 0.0
  %591 = vmatpush1.msra.mxu0 0.0
  %592 = vmatprep.subr.mxu0 0.0
  %593 = vmatpush1.msra.mxu0 0.0
  %594 = vmatprep.subr.mxu0 0.0
  %595 = vmatpush1.msra.mxu0 0.0
  %596 = vmatprep.subr.mxu0 0.0
  %597 = vmatpush1.msra.mxu0 0.0
  %598 = vmatprep.subr.mxu0 0.0
  %599 = vmatpush1.msra.mxu0 0.0
  %600 = vmatprep.subr.mxu0 0.0
  %601 = vmatpush1.msra.mxu0 0.0
  %602 = vmatprep.subr.mxu0 0.0
  %603 = vmatpush1.msra.mxu0 0.0
  %604 = vmatprep.subr.mxu0 0.0
  %605 = vmatpush1.msra.mxu0 %v577
  %606 = vmatprep.subr.mxu0 0.0
  %607 = vmatpush1.msra.mxu0 %v576
  %608 = vmatprep.subr.mxu0 0.0
  %609 = vmatpush1.msra.mxu0 %v575
  %610 = vmatprep.subr.mxu0 0.0
  %611 = vmatpush1.msra.mxu0 %v574
  %612 = vmatprep.subr.mxu0 0.0
  %613 = vmatpush2.msra.mxu0 0.0
  %614 = vmatprep.subr.mxu0 0.0
  %615 = vmatpush2.msra.mxu0 0.0
  %616 = vmatprep.subr.mxu0 0.0
  %617 = vmatpush2.msra.mxu0 0.0
  %618 = vmatprep.subr.mxu0 0.0
  %619 = vmatpush2.msra.mxu0 0.0
  %620 = vmatprep.subr.mxu0 0.0
  %621 = vmatpush2.msra.mxu0 0.0
  %622 = vmatprep.subr.mxu0 0.0
  %623 = vmatpush2.msra.mxu0 0.0
  %624 = vmatprep.subr.mxu0 0.0
  %625 = vmatpush2.msra.mxu0 0.0
  %626 = vmatprep.subr.mxu0 0.0
  %627 = vmatpush2.msra.mxu0 0.0
  %628 = vmatprep.subr.mxu0 0.0
  %629 = vmatpush2.msra.mxu0 0.0
  %630 = vmatprep.subr.mxu0 0.0
  %631 = vmatpush2.msra.mxu0 0.0
  %632 = vmatprep.subr.mxu0 0.0
  %633 = vmatpush2.msra.mxu0 0.0
  %634 = vmatprep.subr.mxu0 0.0
  %635 = vmatpush2.msra.mxu0 0.0
  %636 = vmatprep.subr.mxu0 0.0
  %637 = vmatpush2.msra.mxu0 0.0
  %638 = vmatprep.subr.mxu0 0.0
  %639 = vmatpush2.msra.mxu0 0.0
  %640 = vmatprep.subr.mxu0 0.0
  %641 = vmatpush2.msra.mxu0 0.0
  %642 = vmatprep.subr.mxu0 0.0
  %643 = vmatpush2.msra.mxu0 0.0
  %644 = vmatprep.mubr.f32.mxu0 0.0
  %645 = vmatmul.mubr.f32.gmra.mxu0 %v578
  %v646 = vpop.f32.mrf.mxu0
  %v647 = vadd.f32 0.0, %v646
  %v648 = vpop.f32.mrf.mxu0
  %649 = vdwg.mxu0
  %v650 = vadd.f32 %v573, %v647
  %v651 = vxor.u32 %v650, 2147483648
  %v652 = vmul.f32 %v651, 1.442695
  %v653 = vpow.pop %v652
  %v654 = vadd.f32 %v653, 1.0
  %v655 = vrcp.pop %v654
  %v656 = vmul.f32 1.0, %v655
  %v657 = vtanh.pop %v650
  %v658 = vmul.f32 %v656, %v559
  %660 = vrot.lane.b32.xlu0 %v657, 64
  %v661 = vpop.permute.xlu0 %660
  %v663 = vmul.f32 %v656, %v661
  %665 = vrot.lane.b32.xlu0 %v663, 32
  %v666 = vpop.permute.xlu0 %665
  %v668 = vadd.f32 %v658, %v666
  %v669 = vtanh.pop %v668
  %671 = vrot.lane.b32.xlu0 %v669, 64
  %v672 = vpop.permute.xlu0 %671
  %v674 = vmul.f32 %v656, %v672
  %676 = vrot.lane.b32.xlu0 %v674, 32
  %v677 = vpop.permute.xlu0 %676
  %s679 = scalar_lea.vmem %s4, 10
  %680 = vst.msk [vmem:[%s679] sm:$0x3] %vm134, %v677
  %s681 = scalar_lea.vmem %s0, 12
  %v682 = vld [vmem:[%s681] sm:$0x3]
  %v683 = vld [vmem:[%s3] sm:$0xff]
  %v684 = vld [vmem:[%s3 + $0x8] sm:$0xff]
  %v685 = vld [vmem:[%s3 + $0x10] sm:$0xff]
  %v686 = vld [vmem:[%s3 + $0x18] sm:$0xff]
  %v687 = vsel %vm27, %v677, 0
  %689 = vmatprep.subr.mxu0 0.0
  %690 = vmatpush1.msra.mxu0 0.0
  %691 = vmatprep.subr.mxu0 0.0
  %692 = vmatpush1.msra.mxu0 0.0
  %693 = vmatprep.subr.mxu0 0.0
  %694 = vmatpush1.msra.mxu0 0.0
  %695 = vmatprep.subr.mxu0 0.0
  %696 = vmatpush1.msra.mxu0 0.0
  %697 = vmatprep.subr.mxu0 0.0
  %698 = vmatpush1.msra.mxu0 0.0
  %699 = vmatprep.subr.mxu0 0.0
  %700 = vmatpush1.msra.mxu0 0.0
  %701 = vmatprep.subr.mxu0 0.0
  %702 = vmatpush1.msra.mxu0 0.0
  %703 = vmatprep.subr.mxu0 0.0
  %704 = vmatpush1.msra.mxu0 0.0
  %705 = vmatprep.subr.mxu0 0.0
  %706 = vmatpush1.msra.mxu0 0.0
  %707 = vmatprep.subr.mxu0 0.0
  %708 = vmatpush1.msra.mxu0 0.0
  %709 = vmatprep.subr.mxu0 0.0
  %710 = vmatpush1.msra.mxu0 0.0
  %711 = vmatprep.subr.mxu0 0.0
  %712 = vmatpush1.msra.mxu0 0.0
  %713 = vmatprep.subr.mxu0 0.0
  %714 = vmatpush1.msra.mxu0 %v686
  %715 = vmatprep.subr.mxu0 0.0
  %716 = vmatpush1.msra.mxu0 %v685
  %717 = vmatprep.subr.mxu0 0.0
  %718 = vmatpush1.msra.mxu0 %v684
  %719 = vmatprep.subr.mxu0 0.0
  %720 = vmatpush1.msra.mxu0 %v683
  %721 = vmatprep.subr.mxu0 0.0
  %722 = vmatpush2.msra.mxu0 0.0
  %723 = vmatprep.subr.mxu0 0.0
  %724 = vmatpush2.msra.mxu0 0.0
  %725 = vmatprep.subr.mxu0 0.0
  %726 = vmatpush2.msra.mxu0 0.0
  %727 = vmatprep.subr.mxu0 0.0
  %728 = vmatpush2.msra.mxu0 0.0
  %729 = vmatprep.subr.mxu0 0.0
  %730 = vmatpush2.msra.mxu0 0.0
  %731 = vmatprep.subr.mxu0 0.0
  %732 = vmatpush2.msra.mxu0 0.0
  %733 = vmatprep.subr.mxu0 0.0
  %734 = vmatpush2.msra.mxu0 0.0
  %735 = vmatprep.subr.mxu0 0.0
  %736 = vmatpush2.msra.mxu0 0.0
  %737 = vmatprep.subr.mxu0 0.0
  %738 = vmatpush2.msra.mxu0 0.0
  %739 = vmatprep.subr.mxu0 0.0
  %740 = vmatpush2.msra.mxu0 0.0
  %741 = vmatprep.subr.mxu0 0.0
  %742 = vmatpush2.msra.mxu0 0.0
  %743 = vmatprep.subr.mxu0 0.0
  %744 = vmatpush2.msra.mxu0 0.0
  %745 = vmatprep.subr.mxu0 0.0
  %746 = vmatpush2.msra.mxu0 0.0
  %747 = vmatprep.subr.mxu0 0.0
  %748 = vmatpush2.msra.mxu0 0.0
  %749 = vmatprep.subr.mxu0 0.0
  %750 = vmatpush2.msra.mxu0 0.0
  %751 = vmatprep.subr.mxu0 0.0
  %752 = vmatpush2.msra.mxu0 0.0
  %753 = vmatprep.mubr.f32.mxu0 0.0
  %754 = vmatmul.mubr.f32.gmra.mxu0 %v687
  %v755 = vpop.f32.mrf.mxu0
  %v756 = vadd.f32 0.0, %v755
  %v757 = vpop.f32.mrf.mxu0
  %758 = vdwg.mxu0
  %v759 = vadd.f32 %v682, %v756
  %v760 = vxor.u32 %v759, 2147483648
  %v761 = vmul.f32 %v760, 1.442695
  %v762 = vpow.pop %v761
  %v763 = vadd.f32 %v762, 1.0
  %v764 = vrcp.pop %v763
  %v765 = vmul.f32 1.0, %v764
  %v766 = vtanh.pop %v759
  %v767 = vmul.f32 %v765, %v668
  %769 = vrot.lane.b32.xlu0 %v766, 64
  %v770 = vpop.permute.xlu0 %769
  %v772 = vmul.f32 %v765, %v770
  %774 = vrot.lane.b32.xlu0 %v772, 32
  %v775 = vpop.permute.xlu0 %774
  %v777 = vadd.f32 %v767, %v775
  %v778 = vtanh.pop %v777
  %780 = vrot.lane.b32.xlu0 %v778, 64
  %v781 = vpop.permute.xlu0 %780
  %v783 = vmul.f32 %v765, %v781
  %785 = vrot.lane.b32.xlu0 %v783, 32
  %v786 = vpop.permute.xlu0 %785
  %s788 = scalar_lea.vmem %s4, 12
  %789 = vst.msk [vmem:[%s788] sm:$0x3] %vm134, %v786
  %s790 = scalar_lea.vmem %s0, 14
  %v791 = vld [vmem:[%s790] sm:$0x3]
  %v792 = vld [vmem:[%s3] sm:$0xff]
  %v793 = vld [vmem:[%s3 + $0x8] sm:$0xff]
  %v794 = vld [vmem:[%s3 + $0x10] sm:$0xff]
  %v795 = vld [vmem:[%s3 + $0x18] sm:$0xff]
  %v796 = vsel %vm27, %v786, 0
  %798 = vmatprep.subr.mxu0 0.0
  %799 = vmatpush1.msra.mxu0 0.0
  %800 = vmatprep.subr.mxu0 0.0
  %801 = vmatpush1.msra.mxu0 0.0
  %802 = vmatprep.subr.mxu0 0.0
  %803 = vmatpush1.msra.mxu0 0.0
  %804 = vmatprep.subr.mxu0 0.0
  %805 = vmatpush1.msra.mxu0 0.0
  %806 = vmatprep.subr.mxu0 0.0
  %807 = vmatpush1.msra.mxu0 0.0
  %808 = vmatprep.subr.mxu0 0.0
  %809 = vmatpush1.msra.mxu0 0.0
  %810 = vmatprep.subr.mxu0 0.0
  %811 = vmatpush1.msra.mxu0 0.0
  %812 = vmatprep.subr.mxu0 0.0
  %813 = vmatpush1.msra.mxu0 0.0
  %814 = vmatprep.subr.mxu0 0.0
  %815 = vmatpush1.msra.mxu0 0.0
  %816 = vmatprep.subr.mxu0 0.0
  %817 = vmatpush1.msra.mxu0 0.0
  %818 = vmatprep.subr.mxu0 0.0
  %819 = vmatpush1.msra.mxu0 0.0
  %820 = vmatprep.subr.mxu0 0.0
  %821 = vmatpush1.msra.mxu0 0.0
  %822 = vmatprep.subr.mxu0 0.0
  %823 = vmatpush1.msra.mxu0 %v795
  %824 = vmatprep.subr.mxu0 0.0
  %825 = vmatpush1.msra.mxu0 %v794
  %826 = vmatprep.subr.mxu0 0.0
  %827 = vmatpush1.msra.mxu0 %v793
  %828 = vmatprep.subr.mxu0 0.0
  %829 = vmatpush1.msra.mxu0 %v792
  %830 = vmatprep.subr.mxu0 0.0
  %831 = vmatpush2.msra.mxu0 0.0
  %832 = vmatprep.subr.mxu0 0.0
  %833 = vmatpush2.msra.mxu0 0.0
  %834 = vmatprep.subr.mxu0 0.0
  %835 = vmatpush2.msra.mxu0 0.0
  %836 = vmatprep.subr.mxu0 0.0
  %837 = vmatpush2.msra.mxu0 0.0
  %838 = vmatprep.subr.mxu0 0.0
  %839 = vmatpush2.msra.mxu0 0.0
  %840 = vmatprep.subr.mxu0 0.0
  %841 = vmatpush2.msra.mxu0 0.0
  %842 = vmatprep.subr.mxu0 0.0
  %843 = vmatpush2.msra.mxu0 0.0
  %844 = vmatprep.subr.mxu0 0.0
  %845 = vmatpush2.msra.mxu0 0.0
  %846 = vmatprep.subr.mxu0 0.0
  %847 = vmatpush2.msra.mxu0 0.0
  %848 = vmatprep.subr.mxu0 0.0
  %849 = vmatpush2.msra.mxu0 0.0
  %850 = vmatprep.subr.mxu0 0.0
  %851 = vmatpush2.msra.mxu0 0.0
  %852 = vmatprep.subr.mxu0 0.0
  %853 = vmatpush2.msra.mxu0 0.0
  %854 = vmatprep.subr.mxu0 0.0
  %855 = vmatpush2.msra.mxu0 0.0
  %856 = vmatprep.subr.mxu0 0.0
  %857 = vmatpush2.msra.mxu0 0.0
  %858 = vmatprep.subr.mxu0 0.0
  %859 = vmatpush2.msra.mxu0 0.0
  %860 = vmatprep.subr.mxu0 0.0
  %861 = vmatpush2.msra.mxu0 0.0
  %862 = vmatprep.mubr.f32.mxu0 0.0
  %863 = vmatmul.mubr.f32.gmra.mxu0 %v796
  %v864 = vpop.f32.mrf.mxu0
  %v865 = vadd.f32 0.0, %v864
  %v866 = vpop.f32.mrf.mxu0
  %867 = vdwg.mxu0
  %v868 = vadd.f32 %v791, %v865
  %v869 = vxor.u32 %v868, 2147483648
  %v870 = vmul.f32 %v869, 1.442695
  %v871 = vpow.pop %v870
  %v872 = vadd.f32 %v871, 1.0
  %v873 = vrcp.pop %v872
  %v874 = vmul.f32 1.0, %v873
  %v875 = vtanh.pop %v868
  %v876 = vmul.f32 %v874, %v777
  %878 = vrot.lane.b32.xlu0 %v875, 64
  %v879 = vpop.permute.xlu0 %878
  %v881 = vmul.f32 %v874, %v879
  %883 = vrot.lane.b32.xlu0 %v881, 32
  %v884 = vpop.permute.xlu0 %883
  %v886 = vadd.f32 %v876, %v884
  %v887 = vtanh.pop %v886
  %889 = vrot.lane.b32.xlu0 %v887, 64
  %v890 = vpop.permute.xlu0 %889
  %v892 = vmul.f32 %v874, %v890
  %894 = vrot.lane.b32.xlu0 %v892, 32
  %v895 = vpop.permute.xlu0 %894
  %s897 = scalar_lea.vmem %s4, 14
  %898 = vst.msk [vmem:[%s897] sm:$0x3] %vm134, %v895
  %899 = vst.msk [vmem:[%s5] sm:$0x3] %vm134, %v895
  %901 = vrot.lane.b32.xlu0 %v886, 96
  %v902 = vpop.permute.xlu0 %901
  %904 = vst.msk [vmem:[%s6] sm:$0x3] %vm134, %v902
  // Predicated region
  $region18: #{decoder_forward.3} parent=0 // pred_check
    _
  $region19: #{decoder_forward.3} parent=0 // pred_check_branch
    %906 = sbr.rel (0) target = $region21
  $region20: #{decoder_forward.3} parent=0 // pred_region
    _
  $region21: #{decoder_forward.3} parent=0 // pred_fallthru
    _
  // Predicated region
  $region22: #{decoder_forward.3} parent=0 // pred_check
    _
  $region23: #{decoder_forward.3} parent=0 // pred_check_branch
    %908 = sbr.rel (0) target = $region25
  $region24: #{decoder_forward.3} parent=0 // pred_region
    _
  $region25: #{decoder_forward.3} parent=0 // pred_fallthru
    _
  // Predicated region
  $region26: #{decoder_forward.3} parent=0 // pred_check
    _
  $region27: #{decoder_forward.3} parent=0 // pred_check_branch
    %910 = sbr.rel (0) target = $region29
  $region28: #{decoder_forward.3} parent=0 // pred_region
    _
  $region29: #{decoder_forward.3} parent=0 // pred_fallthru
    _
  // Predicated region
  $region30: #{decoder_forward.3} parent=0 // pred_check
    _
  $region31: #{decoder_forward.3} parent=0 // pred_check_branch
    %912 = sbr.rel (0) target = $region33
  $region32: #{decoder_forward.3} parent=0 // pred_region
    _
  $region33: #{decoder_forward.3} parent=0 // pred_fallthru
    _
  // Predicated region
  $region34: #{decoder_forward.3} parent=0 // pred_check
    _
  $region35: #{decoder_forward.3} parent=0 // pred_check_branch
    %914 = sbr.rel (0) target = $region37
  $region36: #{decoder_forward.3} parent=0 // pred_region
    _
  $region37: #{decoder_forward.3} parent=0 // pred_fallthru
    _
  // Predicated region
  $region38: #{decoder_forward.3} parent=0 // pred_check
    _
  $region39: #{decoder_forward.3} parent=0 // pred_check_branch
    %916 = sbr.rel (0) target = $region41
  $region40: #{decoder_forward.3} parent=0 // pred_region
    _
  $region41: #{decoder_forward.3} parent=0 // pred_fallthru
    _

</llo_original>
